<compile_context>
chip_gen: v7x
topology: tpu7x:2x2x1
jax: 0.10.0
libtpu: 0.0.40
codegen_flags: <defaults>
</compile_context>

<pallas_src>
from functools import partial

import numpy as np

import jax
import jax.numpy as jnp
from jax import lax
from jax.experimental import pallas as pl
from jax.experimental.pallas import tpu as pltpu


# ----------------------------------------------------------------------------
# Small helpers.
# ----------------------------------------------------------------------------
def _round_up(x, m):
    return ((x + m - 1) // m) * m


def _largest_divisor_tile(extent, align, cap):
    """Largest t <= cap with t % align == 0 and extent % t == 0.

    Falls back to the full extent when `extent` is not a multiple of `align`
    (a full-dim block always satisfies the (8,128) BlockSpec rule).
    """
    if extent % align != 0:
        return extent
    t = (max(min(cap, extent), align) // align) * align
    while t >= align:
        if extent % t == 0:
            return t
        t -= align
    return extent


def _vmem_limit(est_bytes):
    # Never lower the 32 MiB default; cap at 48 MiB so whatever we size here
    # also fits v7x's 64 MiB physical VMEM per TensorCore.
    return int(min(max(2 * est_bytes, 32 * 2 ** 20), 48 * 2 ** 20))


# ----------------------------------------------------------------------------
# Kernel 1: 3x3 "same" conv (no bias) via one K-padded im2col MXU contraction,
#           with an optional fused input epilogue (previous BN affine + ReLU)
#           and packed per-batch BN statistics.
# ----------------------------------------------------------------------------
def _conv3x3_kernel(x_ref, w_ref, scale_ref, shift_ref, y_ref, stats_ref,
                    xpad_ref, patch_ref, *, apply_act):
    """Grid = (N, Co_tiles); one batch element x one Co tile per step.

    x_ref:       (1, H, W, Ci)   un-padded input block (f32 or bf16)
    w_ref:       (KP, TCo)       weight rows (dy*3+dx)*Ci + ci, zero-padded in K
    scale/shift: (1, Ci)         previous-layer BN affine (used iff apply_act)
    y_ref:       (1, H, W, TCo)  raw conv output (pre-BN)
    stats_ref:   (1, 2, TCo)     packed [sum; sum-of-squares] for this block
    xpad_ref:    VMEM (H+2, W+2, Ci) f32 scratch (zero "same" padding)
    patch_ref:   VMEM (H, W, KP)     im2col patch scratch (MXU operand dtype)
    """
    _, H, W, Ci = x_ref.shape
    HW = H * W
    KP = patch_ref.shape[-1]
    K9 = 9 * Ci
    TCo = y_ref.shape[-1]

    # The patch depends only on the batch element; Co is the innermost
    # ('arbitrary') grid axis, so build it once and reuse it across Co tiles.
    @pl.when(pl.program_id(1) == 0)
    def _build_patch():
        x = x_ref[0].astype(jnp.float32)                       # (H, W, Ci)
        if apply_act:
            scale = scale_ref[...].reshape(1, 1, Ci)
            shift = shift_ref[...].reshape(1, 1, Ci)
            x = jnp.maximum(x * scale + shift, 0.0)            # fused BN + ReLU

        # padding=1: zero only the 1-element border strips; the interior is
        # fully overwritten every step, so this stays race-free when the batch
        # axis is sharded 'parallel' across cores.
        zrow = jnp.zeros((1, W + 2, Ci), jnp.float32)
        zcol = jnp.zeros((H, 1, Ci), jnp.float32)
        xpad_ref[0:1, :, :] = zrow
        xpad_ref[H + 1:H + 2, :, :] = zrow
        xpad_ref[1:H + 1, 0:1, :] = zcol
        xpad_ref[1:H + 1, W + 1:W + 2, :] = zcol
        xpad_ref[1:H + 1, 1:W + 1, :] = x
        xp = xpad_ref[...]                                     # (H+2, W+2, Ci)

        # im2col: write each of the 9 taps straight into the K-padded patch
        # scratch at lane offset (dy*3+dx)*Ci (no 9-way concatenate/reshape).
        for t in range(9):
            dy, dx = t // 3, t % 3
            patch_ref[:, :, t * Ci:(t + 1) * Ci] = (
                xp[dy:dy + H, dx:dx + W, :].astype(patch_ref.dtype))
        if KP > K9:
            # Zero the K-pad lanes: weight pad rows are zero too, but
            # uninitialised scratch could hold NaN/Inf (0 * NaN = NaN).
            patch_ref[:, :, K9:] = jnp.zeros((H, W, KP - K9), patch_ref.dtype)

    # Single MXU contraction: (H*W, KP) @ (KP, TCo), f32 accumulate in vregs.
    patch = patch_ref[...].reshape(HW, KP)
    y = jnp.dot(patch, w_ref[...], preferred_element_type=jnp.float32)

    y_ref[...] = y.reshape(1, H, W, TCo).astype(y_ref.dtype)

    # Packed per-(batch, Co-tile) BN statistics: one output block per step,
    # reduced over N in the wrapper (keeps the grid race-free).
    s = jnp.sum(y, axis=0, keepdims=True)                      # (1, TCo)
    q = jnp.sum(y * y, axis=0, keepdims=True)                  # (1, TCo)
    stats_ref[...] = jnp.concatenate([s, q], axis=0).reshape(1, 2, TCo)


def conv3x3_stats_nhwc(x, w_flat, scale, shift, *, apply_act, out_dtype):
    """x: (N,H,W,Ci), w_flat: (KP, Co) zero-padded in K.  Returns (y, stats)."""
    N, H, W, Ci = x.shape
    KP, Co = w_flat.shape
    wsz = np.dtype(w_flat.dtype).itemsize
    osz = np.dtype(out_dtype).itemsize

    # Co tile: full Co when small, else lane-dense 128-aligned tiles.
    TCo = Co if Co <= 256 else _largest_divisor_tile(Co, 128, 256)
    n_co = Co // TCo

    scale = jnp.asarray(scale, jnp.float32).reshape(1, Ci)
    shift = jnp.asarray(shift, jnp.float32).reshape(1, Ci)

    est = (2 * (H * W * Ci * np.dtype(x.dtype).itemsize       # x block
                + KP * TCo * wsz                              # weight tile
                + H * W * TCo * osz                           # y block
                + 2 * TCo * 4 + 2 * Ci * 4)                   # stats + affine
           + (H + 2) * (W + 2) * Ci * 4                       # xpad scratch
           + H * W * KP * wsz)                                # patch scratch

    kernel = partial(_conv3x3_kernel, apply_act=apply_act)
    y, stats = pl.pallas_call(
        kernel,
        grid=(N, n_co),
        in_specs=[
            pl.BlockSpec((1, H, W, Ci), lambda n, c: (n, 0, 0, 0)),
            pl.BlockSpec((KP, TCo), lambda n, c: (0, c)),
            pl.BlockSpec((1, Ci), lambda n, c: (0, 0)),
            pl.BlockSpec((1, Ci), lambda n, c: (0, 0)),
        ],
        out_specs=[
            pl.BlockSpec((1, H, W, TCo), lambda n, c: (n, 0, 0, c)),
            pl.BlockSpec((1, 2, TCo), lambda n, c: (n, 0, c)),
        ],
        out_shape=[
            jax.ShapeDtypeStruct((N, H, W, Co), out_dtype),
            jax.ShapeDtypeStruct((N, 2, Co), jnp.float32),
        ],
        scratch_shapes=[
            pltpu.VMEM((H + 2, W + 2, Ci), jnp.float32),
            pltpu.VMEM((H, W, KP), w_flat.dtype),
        ],
        compiler_params=pltpu.CompilerParams(
            dimension_semantics=("parallel", "arbitrary"),
            vmem_limit_bytes=_vmem_limit(est)),
    )(x, w_flat, scale, shift)
    return y, stats


# ----------------------------------------------------------------------------
# Kernel 2: final fused BatchNorm affine + ReLU on a lane-dense layout.
# ----------------------------------------------------------------------------
def _bn_relu_kernel(y_ref, scale_ref, shift_ref, o_ref):
    y = y_ref[...].astype(jnp.float32)                         # f32 VPU math
    o_ref[...] = jnp.maximum(y * scale_ref[...] + shift_ref[...],
                             0.0).astype(o_ref.dtype)


def bn_relu_nhwc(y, scale, shift):
    """y: (N,H,W,C) -> f32 (N,H,W,C); runs on a lane-dense (N*H, W*C) layout."""
    N, H, W, C = y.shape
    R, L = N * H, W * C
    y2 = y.reshape(R, L)                              # free: NHWC is contiguous
    scale_b = jnp.tile(scale.astype(jnp.float32), W).reshape(1, L)
    shift_b = jnp.tile(shift.astype(jnp.float32), W).reshape(1, L)

    # Byte-budgeted, (8,128)-aligned tile picker (not divisibility alone).
    budget = 8 * 2 ** 20                              # per (in+out) tile
    bpe = np.dtype(y2.dtype).itemsize + 4             # input + f32 output
    tl = _largest_divisor_tile(L, 128, max(128, budget // (8 * bpe)))
    tr = _largest_divisor_tile(R, 8, max(8, budget // (max(tl, 1) * bpe)))
    est = 2 * (tr * tl * bpe) + 2 * 2 * tl * 4

    out = pl.pallas_call(
        _bn_relu_kernel,
        grid=(R // tr, L // tl),
        in_specs=[
            pl.BlockSpec((tr, tl), lambda i, j: (i, j)),
            pl.BlockSpec((1, tl), lambda i, j: (0, j)),
            pl.BlockSpec((1, tl), lambda i, j: (0, j)),
        ],
        out_specs=pl.BlockSpec((tr, tl), lambda i, j: (i, j)),
        out_shape=jax.ShapeDtypeStruct((R, L), jnp.float32),
        compiler_params=pltpu.CompilerParams(
            dimension_semantics=("parallel", "parallel"),
            vmem_limit_bytes=_vmem_limit(est)),
    )(y2, scale_b, shift_b)
    return out.reshape(N, H, W, C)


# ----------------------------------------------------------------------------
# DoubleConv forward (train-mode BatchNorm: biased batch statistics).
# ----------------------------------------------------------------------------
def _bn_affine(stats, count, gamma, beta, eps):
    ssum = jnp.sum(stats[:, 0, :], axis=0)
    ssq = jnp.sum(stats[:, 1, :], axis=0)
    mean = ssum / count
    var = jnp.maximum(ssq / count - mean * mean, 0.0)   # cancellation guard
    scale = gamma * lax.rsqrt(var + eps)
    shift = beta - mean * scale
    return scale, shift


def _flatten_weight(w_oihw, dtype):
    """OIHW -> HWIO -> (9*Ci, Co), zero-padded in K to a multiple of 128."""
    co, ci = w_oihw.shape[0], w_oihw.shape[1]
    k9 = 9 * ci
    kp = _round_up(k9, 128)
    w = jnp.transpose(w_oihw, (2, 3, 1, 0)).reshape(k9, co)  # row=(dy*3+dx)*Ci+c
    if kp > k9:
        w = jnp.pad(w, ((0, kp - k9), (0, 0)))
    return w.astype(dtype)


def double_conv_nchw(x_nchw, params, eps=1e-5, use_bf16=True):
    """DoubleConv forward.  use_bf16=True feeds the MXU bf16 operands and keeps
    the conv intermediates in bf16 (perf default); False keeps full-f32 parity."""
    w1, g1, b1, w2, g2, b2 = params
    cdtype = jnp.bfloat16 if use_bf16 else jnp.float32
    x = jnp.transpose(x_nchw, (0, 2, 3, 1)).astype(jnp.float32)  # NCHW -> NHWC
    N, H, W, Ci = x.shape
    Co = w1.shape[0]
    w1f = _flatten_weight(w1, cdtype)
    w2f = _flatten_weight(w2, cdtype)
    cnt = N * H * W

    # layer 1: conv (raw output) + packed batch stats
    one = jnp.ones((Ci,), jnp.float32)
    zero = jnp.zeros((Ci,), jnp.float32)
    y1, st1 = conv3x3_stats_nhwc(x, w1f, one, zero,
                                 apply_act=False, out_dtype=cdtype)
    sc1, sh1 = _bn_affine(st1, cnt, g1, b1, eps)

    # layer 2: conv with BN1 + ReLU fused as the input epilogue
    y2, st2 = conv3x3_stats_nhwc(y1, w2f, sc1, sh1,
                                 apply_act=True, out_dtype=cdtype)
    sc2, sh2 = _bn_affine(st2, cnt, g2, b2, eps)

    # final BN2 + ReLU (lane-dense elementwise kernel)
    a2 = bn_relu_nhwc(y2, sc2, sh2)
    return jnp.transpose(a2, (0, 3, 1, 2))                       # NHWC -> NCHW


# ----------------------------------------------------------------------------
# Pure-JAX reference (same semantics) for a correctness check.
# ----------------------------------------------------------------------------
def _reference_nchw(x, params, eps=1e-5):
    w1, g1, b1, w2, g2, b2 = params

    def conv_bn_relu(a, w, g, b):
        y = lax.conv_general_dilated(
            a, w, (1, 1), 'SAME',
            dimension_numbers=('NCHW', 'OIHW', 'NCHW'))
        mean = jnp.mean(y, axis=(0, 2, 3))
        var = jnp.var(y, axis=(0, 2, 3))
        yhat = (y - mean[None, :, None, None]) / jnp.sqrt(
            var[None, :, None, None] + eps)
        return jnp.maximum(yhat * g[None, :, None, None]
                           + b[None, :, None, None], 0.0)

    return conv_bn_relu(conv_bn_relu(x, w1, g1, b1), w2, g2, b2)


if __name__ == "__main__":
    N, Cin, Cout, H, W = 2, 4, 8, 16, 16
    key = jax.random.PRNGKey(0)
    kx, k1, k2 = jax.random.split(key, 3)

    x = jax.random.normal(kx, (N, Cin, H, W), jnp.float32)
    # Conv2d weights (PyTorch OIHW shape), deterministic synthetic init.
    w1 = 0.1 * jax.random.normal(k1, (Cout, Cin, 3, 3), jnp.float32)
    w2 = 0.1 * jax.random.normal(k2, (Cout, Cout, 3, 3), jnp.float32)
    # BatchNorm affine params at PyTorch defaults (gamma=1, beta=0).
    g1 = jnp.ones((Cout,), jnp.float32)
    b1 = jnp.zeros((Cout,), jnp.float32)
    g2 = jnp.ones((Cout,), jnp.float32)
    b2 = jnp.zeros((Cout,), jnp.float32)
    params = (w1, g1, b1, w2, g2, b2)

    ref = jax.block_until_ready(_reference_nchw(x, params))

    # f32 MXU path: tight parity with the f32 reference.
    out_f32 = jax.block_until_ready(double_conv_nchw(x, params, use_bf16=False))
    assert out_f32.shape == (N, Cout, H, W), out_f32.shape
    assert jnp.allclose(out_f32, ref, atol=1e-4, rtol=1e-4), \
        float(jnp.max(jnp.abs(out_f32 - ref)))

    # bf16 MXU path (perf default): loose parity gate for bf16 rounding.
    out_bf16 = jax.block_until_ready(double_conv_nchw(x, params, use_bf16=True))
    assert out_bf16.shape == (N, Cout, H, W), out_bf16.shape
    assert jnp.allclose(out_bf16, ref, atol=1e-1, rtol=1e-1), \
        float(jnp.max(jnp.abs(out_bf16 - ref)))

    print("KERNEL_OK")
</pallas_src>

<mosaic_0001>
module attributes {stable_mosaic.version = 11 : i64} {
  func.func @_conv3x3_kernel(%arg0: i32, %arg1: i32, %arg2: memref<1x16x16x4xf32, #tpu.memory_space<vmem>>, %arg3: memref<128x8xf32, #tpu.memory_space<vmem>>, %arg4: memref<1x4xf32, #tpu.memory_space<vmem>>, %arg5: memref<1x4xf32, #tpu.memory_space<vmem>>, %arg6: memref<1x16x16x8xf32, #tpu.memory_space<vmem>>, %arg7: memref<1x2x8xf32, #tpu.memory_space<vmem>>, %arg8: memref<18x18x4xf32, #tpu.memory_space<vmem>>, %arg9: memref<16x16x128xf32, #tpu.memory_space<vmem>>) attributes {dimension_semantics = [#tpu.dimension_semantics<parallel>, #tpu.dimension_semantics<arbitrary>], iteration_bounds = array<i64: 2, 1>, scalar_prefetch = 0 : i64, scratch_operands = 2 : i64, tpu.core_type = #tpu.core_type<tc>, window_params = [{transform_indices = @transform_0, window_bounds = array<i64: 1, 16, 16, 4>}, {transform_indices = @transform_1, window_bounds = array<i64: 128, 8>}, {pipeline_mode = #tpu.pipeline_mode<synchronous>, transform_indices = @transform_2, window_bounds = array<i64: 1, 4>}, {pipeline_mode = #tpu.pipeline_mode<synchronous>, transform_indices = @transform_3, window_bounds = array<i64: 1, 4>}, {transform_indices = @transform_4, window_bounds = array<i64: 1, 16, 16, 8>}, {transform_indices = @transform_5, window_bounds = array<i64: 1, 2, 8>}]} {
    %c0_i32 = arith.constant 0 : i32
    %0 = arith.cmpi eq, %arg1, %c0_i32 : i32
    %1 = arith.extui %0 : i1 to i32
    %c0_i32_0 = arith.constant 0 : i32
    %2 = arith.cmpi ne, %1, %c0_i32_0 : i32
    scf.if %2 {
      %c0_14 = arith.constant 0 : index
      %c0_15 = arith.constant 0 : index
      %c0_16 = arith.constant 0 : index
      %c0_17 = arith.constant 0 : index
      %17 = vector.load %arg2[%c0_14, %c0_15, %c0_16, %c0_17] : memref<1x16x16x4xf32, #tpu.memory_space<vmem>>, vector<1x16x16x4xf32>
      %18 = vector.shape_cast %17 : vector<1x16x16x4xf32> to vector<16x16x4xf32>
      %cst_18 = arith.constant 0.000000e+00 : f32
      %19 = vector.broadcast %cst_18 : f32 to vector<1x18x4xf32>
      %cst_19 = arith.constant 0.000000e+00 : f32
      %20 = vector.broadcast %cst_19 : f32 to vector<16x1x4xf32>
      %c0_20 = arith.constant 0 : index
      %c0_21 = arith.constant 0 : index
      %c0_22 = arith.constant 0 : index
      %21 = vector.load %arg8[%c0_20, %c0_21, %c0_22] : memref<18x18x4xf32, #tpu.memory_space<vmem>>, vector<1x18x4xf32>
      tpu.vector_store %arg8[%c0_20, %c0_21, %c0_22], %19 {strides = array<i32>} : memref<18x18x4xf32, #tpu.memory_space<vmem>>, vector<1x18x4xf32>,
      %c17 = arith.constant 17 : index
      %c0_23 = arith.constant 0 : index
      %c0_24 = arith.constant 0 : index
      %22 = vector.load %arg8[%c17, %c0_23, %c0_24] : memref<18x18x4xf32, #tpu.memory_space<vmem>>, vector<1x18x4xf32>
      tpu.vector_store %arg8[%c17, %c0_23, %c0_24], %19 {strides = array<i32>} : memref<18x18x4xf32, #tpu.memory_space<vmem>>, vector<1x18x4xf32>,
      %c1 = arith.constant 1 : index
      %c0_25 = arith.constant 0 : index
      %c0_26 = arith.constant 0 : index
      %23 = vector.load %arg8[%c1, %c0_25, %c0_26] : memref<18x18x4xf32, #tpu.memory_space<vmem>>, vector<16x1x4xf32>
      tpu.vector_store %arg8[%c1, %c0_25, %c0_26], %20 {strides = array<i32>} : memref<18x18x4xf32, #tpu.memory_space<vmem>>, vector<16x1x4xf32>,
      %c1_27 = arith.constant 1 : index
      %c17_28 = arith.constant 17 : index
      %c0_29 = arith.constant 0 : index
      %24 = vector.load %arg8[%c1_27, %c17_28, %c0_29] : memref<18x18x4xf32, #tpu.memory_space<vmem>>, vector<16x1x4xf32>
      tpu.vector_store %arg8[%c1_27, %c17_28, %c0_29], %20 {strides = array<i32>} : memref<18x18x4xf32, #tpu.memory_space<vmem>>, vector<16x1x4xf32>,
      %c1_30 = arith.constant 1 : index
      %c1_31 = arith.constant 1 : index
      %c0_32 = arith.constant 0 : index
      %25 = vector.load %arg8[%c1_30, %c1_31, %c0_32] : memref<18x18x4xf32, #tpu.memory_space<vmem>>, vector<16x16x4xf32>
      tpu.vector_store %arg8[%c1_30, %c1_31, %c0_32], %18 {strides = array<i32>} : memref<18x18x4xf32, #tpu.memory_space<vmem>>, vector<16x16x4xf32>,
      %c0_33 = arith.constant 0 : index
      %c0_34 = arith.constant 0 : index
      %c0_35 = arith.constant 0 : index
      %26 = vector.load %arg8[%c0_33, %c0_34, %c0_35] : memref<18x18x4xf32, #tpu.memory_space<vmem>>, vector<18x18x4xf32>
      %27 = vector.extract_strided_slice %26 {offsets = [0, 0, 0], sizes = [16, 16, 4], strides = [1, 1, 1]} : vector<18x18x4xf32> to vector<16x16x4xf32>
      %c0_36 = arith.constant 0 : index
      %c0_37 = arith.constant 0 : index
      %c0_38 = arith.constant 0 : index
      %28 = vector.load %arg9[%c0_36, %c0_37, %c0_38] : memref<16x16x128xf32, #tpu.memory_space<vmem>>, vector<16x16x4xf32>
      tpu.vector_store %arg9[%c0_36, %c0_37, %c0_38], %27 {strides = array<i32>} : memref<16x16x128xf32, #tpu.memory_space<vmem>>, vector<16x16x4xf32>,
      %29 = vector.extract_strided_slice %26 {offsets = [0, 1, 0], sizes = [16, 16, 4], strides = [1, 1, 1]} : vector<18x18x4xf32> to vector<16x16x4xf32>
      %c0_39 = arith.constant 0 : index
      %c0_40 = arith.constant 0 : index
      %c4 = arith.constant 4 : index
      %30 = vector.load %arg9[%c0_39, %c0_40, %c4] : memref<16x16x128xf32, #tpu.memory_space<vmem>>, vector<16x16x4xf32>
      tpu.vector_store %arg9[%c0_39, %c0_40, %c4], %29 {strides = array<i32>} : memref<16x16x128xf32, #tpu.memory_space<vmem>>, vector<16x16x4xf32>,
      %31 = vector.extract_strided_slice %26 {offsets = [0, 2, 0], sizes = [16, 16, 4], strides = [1, 1, 1]} : vector<18x18x4xf32> to vector<16x16x4xf32>
      %c0_41 = arith.constant 0 : index
      %c0_42 = arith.constant 0 : index
      %c8 = arith.constant 8 : index
      %32 = vector.load %arg9[%c0_41, %c0_42, %c8] : memref<16x16x128xf32, #tpu.memory_space<vmem>>, vector<16x16x4xf32>
      tpu.vector_store %arg9[%c0_41, %c0_42, %c8], %31 {strides = array<i32>} : memref<16x16x128xf32, #tpu.memory_space<vmem>>, vector<16x16x4xf32>,
      %33 = vector.extract_strided_slice %26 {offsets = [1, 0, 0], sizes = [16, 16, 4], strides = [1, 1, 1]} : vector<18x18x4xf32> to vector<16x16x4xf32>
      %c0_43 = arith.constant 0 : index
      %c0_44 = arith.constant 0 : index
      %c12 = arith.constant 12 : index
      %34 = vector.load %arg9[%c0_43, %c0_44, %c12] : memref<16x16x128xf32, #tpu.memory_space<vmem>>, vector<16x16x4xf32>
      tpu.vector_store %arg9[%c0_43, %c0_44, %c12], %33 {strides = array<i32>} : memref<16x16x128xf32, #tpu.memory_space<vmem>>, vector<16x16x4xf32>,
      %35 = vector.extract_strided_slice %26 {offsets = [1, 1, 0], sizes = [16, 16, 4], strides = [1, 1, 1]} : vector<18x18x4xf32> to vector<16x16x4xf32>
      %c0_45 = arith.constant 0 : index
      %c0_46 = arith.constant 0 : index
      %c16 = arith.constant 16 : index
      %36 = vector.load %arg9[%c0_45, %c0_46, %c16] : memref<16x16x128xf32, #tpu.memory_space<vmem>>, vector<16x16x4xf32>
      tpu.vector_store %arg9[%c0_45, %c0_46, %c16], %35 {strides = array<i32>} : memref<16x16x128xf32, #tpu.memory_space<vmem>>, vector<16x16x4xf32>,
      %37 = vector.extract_strided_slice %26 {offsets = [1, 2, 0], sizes = [16, 16, 4], strides = [1, 1, 1]} : vector<18x18x4xf32> to vector<16x16x4xf32>
      %c0_47 = arith.constant 0 : index
      %c0_48 = arith.constant 0 : index
      %c20 = arith.constant 20 : index
      %38 = vector.load %arg9[%c0_47, %c0_48, %c20] : memref<16x16x128xf32, #tpu.memory_space<vmem>>, vector<16x16x4xf32>
      tpu.vector_store %arg9[%c0_47, %c0_48, %c20], %37 {strides = array<i32>} : memref<16x16x128xf32, #tpu.memory_space<vmem>>, vector<16x16x4xf32>,
      %39 = vector.extract_strided_slice %26 {offsets = [2, 0, 0], sizes = [16, 16, 4], strides = [1, 1, 1]} : vector<18x18x4xf32> to vector<16x16x4xf32>
      %c0_49 = arith.constant 0 : index
      %c0_50 = arith.constant 0 : index
      %c24 = arith.constant 24 : index
      %40 = vector.load %arg9[%c0_49, %c0_50, %c24] : memref<16x16x128xf32, #tpu.memory_space<vmem>>, vector<16x16x4xf32>
      tpu.vector_store %arg9[%c0_49, %c0_50, %c24], %39 {strides = array<i32>} : memref<16x16x128xf32, #tpu.memory_space<vmem>>, vector<16x16x4xf32>,
      %41 = vector.extract_strided_slice %26 {offsets = [2, 1, 0], sizes = [16, 16, 4], strides = [1, 1, 1]} : vector<18x18x4xf32> to vector<16x16x4xf32>
      %c0_51 = arith.constant 0 : index
      %c0_52 = arith.constant 0 : index
      %c28 = arith.constant 28 : index
      %42 = vector.load %arg9[%c0_51, %c0_52, %c28] : memref<16x16x128xf32, #tpu.memory_space<vmem>>, vector<16x16x4xf32>
      tpu.vector_store %arg9[%c0_51, %c0_52, %c28], %41 {strides = array<i32>} : memref<16x16x128xf32, #tpu.memory_space<vmem>>, vector<16x16x4xf32>,
      %43 = vector.extract_strided_slice %26 {offsets = [2, 2, 0], sizes = [16, 16, 4], strides = [1, 1, 1]} : vector<18x18x4xf32> to vector<16x16x4xf32>
      %c0_53 = arith.constant 0 : index
      %c0_54 = arith.constant 0 : index
      %c32 = arith.constant 32 : index
      %44 = vector.load %arg9[%c0_53, %c0_54, %c32] : memref<16x16x128xf32, #tpu.memory_space<vmem>>, vector<16x16x4xf32>
      tpu.vector_store %arg9[%c0_53, %c0_54, %c32], %43 {strides = array<i32>} : memref<16x16x128xf32, #tpu.memory_space<vmem>>, vector<16x16x4xf32>,
      %cst_55 = arith.constant 0.000000e+00 : f32
      %45 = vector.broadcast %cst_55 : f32 to vector<16x16x92xf32>
      %c0_56 = arith.constant 0 : index
      %c0_57 = arith.constant 0 : index
      %c36 = arith.constant 36 : index
      %46 = vector.load %arg9[%c0_56, %c0_57, %c36] : memref<16x16x128xf32, #tpu.memory_space<vmem>>, vector<16x16x92xf32>
      tpu.vector_store %arg9[%c0_56, %c0_57, %c36], %45 {strides = array<i32>} : memref<16x16x128xf32, #tpu.memory_space<vmem>>, vector<16x16x92xf32>,
    } else {
    }
    %c0 = arith.constant 0 : index
    %c0_1 = arith.constant 0 : index
    %c0_2 = arith.constant 0 : index
    %3 = vector.load %arg9[%c0, %c0_1, %c0_2] : memref<16x16x128xf32, #tpu.memory_space<vmem>>, vector<16x16x128xf32>
    %4 = vector.shape_cast %3 : vector<16x16x128xf32> to vector<256x128xf32>
    %c0_3 = arith.constant 0 : index
    %c0_4 = arith.constant 0 : index
    %5 = vector.load %arg3[%c0_3, %c0_4] : memref<128x8xf32, #tpu.memory_space<vmem>>, vector<128x8xf32>
    %cst = arith.constant dense<0.000000e+00> : vector<256x8xf32>
    %6 = tpu.matmul %4, %5, %cst {dimension_numbers = #tpu.dot_dimension_numbers<[1], [0], [0], [1], [0, 0, 1, 1], [], []>} : vector<256x128xf32>, vector<128x8xf32>, vector<256x8xf32> -> vector<256x8xf32>
    %7 = vector.shape_cast %6 : vector<256x8xf32> to vector<1x16x16x8xf32>
    %c0_5 = arith.constant 0 : index
    %c0_6 = arith.constant 0 : index
    %c0_7 = arith.constant 0 : index
    %c0_8 = arith.constant 0 : index
    %8 = vector.load %arg6[%c0_5, %c0_6, %c0_7, %c0_8] : memref<1x16x16x8xf32, #tpu.memory_space<vmem>>, vector<1x16x16x8xf32>
    tpu.vector_store %arg6[%c0_5, %c0_6, %c0_7, %c0_8], %7 {strides = array<i32>} : memref<1x16x16x8xf32, #tpu.memory_space<vmem>>, vector<1x16x16x8xf32>,
    %cst_9 = arith.constant dense<0.000000e+00> : vector<8xf32>
    %9 = vector.multi_reduction <add>, %6, %cst_9 [0] : vector<256x8xf32> to vector<8xf32>
    %10 = vector.shape_cast %9 : vector<8xf32> to vector<1x8xf32>
    %11 = arith.mulf %6, %6 : vector<256x8xf32>
    %cst_10 = arith.constant dense<0.000000e+00> : vector<8xf32>
    %12 = vector.multi_reduction <add>, %11, %cst_10 [0] : vector<256x8xf32> to vector<8xf32>
    %13 = vector.shape_cast %12 : vector<8xf32> to vector<1x8xf32>
    %14 = tpu.concatenate %10, %13 in 0 : vector<1x8xf32>, vector<1x8xf32> -> vector<2x8xf32>
    %15 = vector.shape_cast %14 : vector<2x8xf32> to vector<1x2x8xf32>
    %c0_11 = arith.constant 0 : index
    %c0_12 = arith.constant 0 : index
    %c0_13 = arith.constant 0 : index
    %16 = vector.load %arg7[%c0_11, %c0_12, %c0_13] : memref<1x2x8xf32, #tpu.memory_space<vmem>>, vector<1x2x8xf32>
    tpu.vector_store %arg7[%c0_11, %c0_12, %c0_13], %15 {strides = array<i32>} : memref<1x2x8xf32, #tpu.memory_space<vmem>>, vector<1x2x8xf32>,
    return
  }
  func.func @transform_0(%arg0: i32, %arg1: i32) -> (i32, i32, i32, i32) {
    %c0_i32 = arith.constant 0 : i32
    %c0_i32_0 = arith.constant 0 : i32
    %c0_i32_1 = arith.constant 0 : i32
    %c0_i32_2 = arith.constant 0 : i32
    return %arg0, %c0_i32, %c0_i32_0, %c0_i32_1 : i32, i32, i32, i32
  }
  func.func @transform_1(%arg0: i32, %arg1: i32) -> (i32, i32) {
    %c0_i32 = arith.constant 0 : i32
    %c0_i32_0 = arith.constant 0 : i32
    return %c0_i32, %arg1 : i32, i32
  }
  func.func @transform_2(%arg0: i32, %arg1: i32) -> (i32, i32) {
    %c0_i32 = arith.constant 0 : i32
    %c0_i32_0 = arith.constant 0 : i32
    %c0_i32_1 = arith.constant 0 : i32
    return %c0_i32, %c0_i32_0 : i32, i32
  }
  func.func @transform_3(%arg0: i32, %arg1: i32) -> (i32, i32) {
    %c0_i32 = arith.constant 0 : i32
    %c0_i32_0 = arith.constant 0 : i32
    %c0_i32_1 = arith.constant 0 : i32
    return %c0_i32, %c0_i32_0 : i32, i32
  }
  func.func @transform_4(%arg0: i32, %arg1: i32) -> (i32, i32, i32, i32) {
    %c0_i32 = arith.constant 0 : i32
    %c0_i32_0 = arith.constant 0 : i32
    %c0_i32_1 = arith.constant 0 : i32
    return %arg0, %c0_i32, %c0_i32_0, %arg1 : i32, i32, i32, i32
  }
  func.func @transform_5(%arg0: i32, %arg1: i32) -> (i32, i32, i32) {
    %c0_i32 = arith.constant 0 : i32
    %c0_i32_0 = arith.constant 0 : i32
    return %arg0, %c0_i32, %arg1 : i32, i32, i32
  }
}

</mosaic_0001>

<llo_original>
// kernel: tpu_custom_call.1
$region0: #{tpu_custom_call.1}
  #allocation0 [shape = 'u32[]', space=smem, size = 0x4, offset = 0x4, fixed_abs, tag = 'smem constant byte address 0x4 - core index']
  #allocation1 [shape = 'u32[144,128]{1,0:T(1,128)}', space=vmem, size = 0x12000, scoped, tag = 'internal scratch']
  #allocation2 [shape = 'f32[18,18,4]{2,1,0:T(8,128)}', space=vmem, size = 0x36000, scoped, tag = 'scratch operand']
  #allocation3 [shape = 'f32[16,16,128]{2,1,0:T(8,128)}', space=vmem, size = 0x20000, scoped, tag = 'scratch operand']
  %s0 = inlined_call_operand.vmem [shape: f32[2,16,16,4], index: 0, kind: input, shape index: {}]
  %s1 = inlined_call_operand.vmem [shape: f32[128,8], index: 1, kind: input, shape index: {}]
  %s2 = inlined_call_operand.vmem [shape: f32[1,4], index: 2, kind: input, shape index: {}]
  %s3 = inlined_call_operand.vmem [shape: f32[1,4], index: 3, kind: input, shape index: {}]
  %s4 = inlined_call_operand.vmem [shape: f32[2,16,16,8], index: 4, kind: output, shape index: {0}]
  %s5 = inlined_call_operand.hbm [shape: f32[2,2,8], index: 5, kind: output, shape index: {1}]
  %6 = xla_tuple %s4, %s5
  %s7 = sld [smem:[#allocation0]]
  $region61: #{tpu_custom_call.1} parent=0
    _
  %s9 = ssub.s32 1, %s7
  %s10 = scalar_select 0, %s9, %s7
  $region1: #{tpu_custom_call.1} parent=0
    #allocation4 [shape = 'u8[2048]{0}', space=vmem, size = 0x800, scoped, tag = 'output window, operand 1']
    #allocation5 [shape = 's32[2]{0}', space=sflag, size = 0x8, scoped, tag = 'scoped memory for tpu_custom_call.1']
    %11 = vsyncpa [#allocation5], 0
    %s12 = scalar_lea.sflag [#allocation5], 1
    %13 = vsyncpa %s12, 0
    loop: start=0, step=1, limit=4
    $region2: #{tpu_custom_call.1} parent=1 // loop_pre_header
      _
    $region3: #{tpu_custom_call.1} parent=1 // loop_header
      %s15 = sphi 0, %s19
      %p16 = scmp.ge.s32.totalorder %s15, 4
      %s22 = sphi 0, %s34
      %s23 = sphi 0, %s30
      %s24 = sphi 0, %s22
      %s25 = sphi 0, %s23
      %s26 = sphi 0, %s24
      %s27 = sphi 0, %s25
      %s37 = sphi 0, %s39
      %s40 = sphi 0, %s37
      %s41 = sphi 0, %s40
      %s57 = sphi 0, %s41
      %s63 = sphi 0, %s65
      %s66 = sphi 0, %s63
      %s67 = sphi 0, %s66
      %s83 = sphi 0, %s67
      %s87 = sphi 0, %s87
      %s89 = sphi 0, %s87
      %s90 = sphi 0, %s89
      %s104 = sphi 0, %s90
      %s108 = sphi 0, %s108
      %s110 = sphi 0, %s108
      %s111 = sphi 0, %s110
      %s125 = sphi 0, %s111
      %s133 = sphi 0, %s135
      %s136 = sphi 0, %s133
      %s137 = sphi 0, %s136
      %s153 = sphi 0, %s137
      %s161 = sphi 0, %s163
      %s164 = sphi 0, %s161
      %s165 = sphi 0, %s164
      %s181 = sphi 0, %s165
    $region4: #{tpu_custom_call.1} parent=1 // loop_header_branch
      %18 = sbr.rel (%p16) target = $region8
    $region5: #{tpu_custom_call.1} parent=1 // loop_body
      %s20 = ssub.s32 %s15, 1
      %s21 = ssub.s32 %s15, 2
      %s28 = sadd.s32 1, %s23
      %p29 = scmp.ge.s32.totalorder %s28, 1
      %s30 = scalar_select %p29, 0, %s28
      %s31 = sadd.s32 1, %s22
      %s32 = scalar_select %p29, %s31, %s22
      %p33 = scmp.ge.s32.totalorder %s32, 2
      %s34 = scalar_select %p33, 0, %s32
      %s35 = ssub.s32 %s22, %s34
      %p36 = scmp.eq.s32.totalorder %s35, 0
      %s38 = sadd.s32 %s37, 1
      %s39 = scalar_select %p36, %s37, %s38
      %p42 = pneg %p36
      %p43 = scmp.eq.s32.totalorder %s15, 1
      %p44 = por %p42, %p43
      %p45 = scmp.ne.s32.totalorder %s37, %s40
      %p46 = scmp.eq.s32.totalorder %s15, 0
      %p47 = por %p45, %p46
      %p48 = scmp.ne.s32.totalorder %s37, %s40
      %p49 = scmp.eq.s32.totalorder %s20, 1
      %p50 = por %p48, %p49
      %p51 = scmp.ne.s32.totalorder %s40, %s41
      %p52 = scmp.eq.s32.totalorder %s20, 0
      %p53 = por %p51, %p52
      %p54 = scmp.ne.s32.totalorder %s40, %s41
      %p55 = scmp.eq.s32.totalorder %s21, 1
      %p56 = por %p54, %p55
      %p58 = scmp.ne.s32.totalorder %s41, %s57
      %p59 = scmp.eq.s32.totalorder %s21, 0
      %p60 = por %p58, %p59
      %s61 = ssub.s32 %s23, %s30
      %p62 = scmp.eq.s32.totalorder %s61, 0
      %s64 = sadd.s32 %s63, 1
      %s65 = scalar_select %p62, %s63, %s64
      %p68 = pneg %p62
      %p69 = scmp.eq.s32.totalorder %s15, 1
      %p70 = por %p68, %p69
      %p71 = scmp.ne.s32.totalorder %s63, %s66
      %p72 = scmp.eq.s32.totalorder %s15, 0
      %p73 = por %p71, %p72
      %p74 = scmp.ne.s32.totalorder %s63, %s66
      %p75 = scmp.eq.s32.totalorder %s20, 1
      %p76 = por %p74, %p75
      %p77 = scmp.ne.s32.totalorder %s66, %s67
      %p78 = scmp.eq.s32.totalorder %s20, 0
      %p79 = por %p77, %p78
      %p80 = scmp.ne.s32.totalorder %s66, %s67
      %p81 = scmp.eq.s32.totalorder %s21, 1
      %p82 = por %p80, %p81
      %p84 = scmp.ne.s32.totalorder %s67, %s83
      %p85 = scmp.eq.s32.totalorder %s21, 0
      %p86 = por %p84, %p85
      %s88 = sadd.s32 %s87, 1
      %p91 = scmp.eq.s32.totalorder %s15, 1
      %p92 = scmp.ne.s32.totalorder %s87, %s89
      %p93 = scmp.eq.s32.totalorder %s15, 0
      %p94 = por %p92, %p93
      %p95 = scmp.ne.s32.totalorder %s87, %s89
      %p96 = scmp.eq.s32.totalorder %s20, 1
      %p97 = por %p95, %p96
      %p98 = scmp.ne.s32.totalorder %s89, %s90
      %p99 = scmp.eq.s32.totalorder %s20, 0
      %p100 = por %p98, %p99
      %p101 = scmp.ne.s32.totalorder %s89, %s90
      %p102 = scmp.eq.s32.totalorder %s21, 1
      %p103 = por %p101, %p102
      %p105 = scmp.ne.s32.totalorder %s90, %s104
      %p106 = scmp.eq.s32.totalorder %s21, 0
      %p107 = por %p105, %p106
      %s109 = sadd.s32 %s108, 1
      %p112 = scmp.eq.s32.totalorder %s15, 1
      %p113 = scmp.ne.s32.totalorder %s108, %s110
      %p114 = scmp.eq.s32.totalorder %s15, 0
      %p115 = por %p113, %p114
      %p116 = scmp.ne.s32.totalorder %s108, %s110
      %p117 = scmp.eq.s32.totalorder %s20, 1
      %p118 = por %p116, %p117
      %p119 = scmp.ne.s32.totalorder %s110, %s111
      %p120 = scmp.eq.s32.totalorder %s20, 0
      %p121 = por %p119, %p120
      %p122 = scmp.ne.s32.totalorder %s110, %s111
      %p123 = scmp.eq.s32.totalorder %s21, 1
      %p124 = por %p122, %p123
      %p126 = scmp.ne.s32.totalorder %s111, %s125
      %p127 = scmp.eq.s32.totalorder %s21, 0
      %p128 = por %p126, %p127
      %s129 = ssub.s32 %s22, %s34
      %s130 = ssub.s32 %s23, %s30
      %s131 = sor.u32 %s129, %s130
      %p132 = scmp.eq.s32.totalorder %s131, 0
      %s134 = sadd.s32 %s133, 1
      %s135 = scalar_select %p132, %s133, %s134
      %p138 = pneg %p132
      %p139 = scmp.eq.s32.totalorder %s15, 1
      %p140 = por %p138, %p139
      %p141 = scmp.ne.s32.totalorder %s133, %s136
      %p142 = scmp.eq.s32.totalorder %s15, 0
      %p143 = por %p141, %p142
      %p144 = scmp.ne.s32.totalorder %s133, %s136
      %p145 = scmp.eq.s32.totalorder %s20, 1
      %p146 = por %p144, %p145
      %p147 = scmp.ne.s32.totalorder %s136, %s137
      %p148 = scmp.eq.s32.totalorder %s20, 0
      %p149 = por %p147, %p148
      %p150 = scmp.ne.s32.totalorder %s136, %s137
      %p151 = scmp.eq.s32.totalorder %s21, 1
      %p152 = por %p150, %p151
      %p154 = scmp.ne.s32.totalorder %s137, %s153
      %p155 = scmp.eq.s32.totalorder %s21, 0
      %p156 = por %p154, %p155
      %s157 = ssub.s32 %s22, %s34
      %s158 = ssub.s32 %s23, %s30
      %s159 = sor.u32 %s157, %s158
      %p160 = scmp.eq.s32.totalorder %s159, 0
      %s162 = sadd.s32 %s161, 1
      %s163 = scalar_select %p160, %s161, %s162
      %p166 = pneg %p160
      %p167 = scmp.eq.s32.totalorder %s15, 1
      %p168 = por %p166, %p167
      %p169 = scmp.ne.s32.totalorder %s161, %s164
      %p170 = scmp.eq.s32.totalorder %s15, 0
      %p171 = por %p169, %p170
      %p172 = scmp.ne.s32.totalorder %s161, %s164
      %p173 = scmp.eq.s32.totalorder %s20, 1
      %p174 = por %p172, %p173
      %p175 = scmp.ne.s32.totalorder %s164, %s165
      %p176 = scmp.eq.s32.totalorder %s20, 0
      %p177 = por %p175, %p176
      %p178 = scmp.ne.s32.totalorder %s164, %s165
      %p179 = scmp.eq.s32.totalorder %s21, 1
      %p180 = por %p178, %p179
      %p182 = scmp.ne.s32.totalorder %s165, %s181
      %p183 = scmp.eq.s32.totalorder %s21, 0
      %p184 = por %p182, %p183
      %p185 = scmp.le.s32.totalorder 1, %s15
      %p186 = scmp.lt.s32.totalorder %s15, 3
      %p187 = pnand %p185, %p186
      %p188 = pneg %p187
      // Predicated region
      $region9: #{tpu_custom_call.1} parent=5 // pred_check
        _
      $region10: #{tpu_custom_call.1} parent=5 // pred_check_branch
        %190 = sbr.rel (%p187) target = $region12
      $region11: #{tpu_custom_call.1} parent=5 // pred_region
        %s191 = ssub.s32 %s15, 1
        // Predicated region
        $region13: #{tpu_custom_call.1} parent=11 // pred_check
          %p192 = pneg %p79
        $region14: #{tpu_custom_call.1} parent=11 // pred_check_branch
          %194 = sbr.rel (%p192) target = $region16
        $region15: #{tpu_custom_call.1} parent=11 // pred_region
          %p195 = scmp.lt.s32.totalorder %s25, 0
          %s196 = scalar_select %p195, %s25, 0
          %s197 = smul.addr %s196, 8
          %s198 = scalar_lea.vmem %s1, %s197
        $region16: #{tpu_custom_call.1} parent=11 // pred_fallthru
          _
        // Predicated region
        $region17: #{tpu_custom_call.1} parent=11 // pred_check
          %p199 = pneg %p100
        $region18: #{tpu_custom_call.1} parent=11 // pred_check_branch
          %201 = sbr.rel (%p199) target = $region20
        $region19: #{tpu_custom_call.1} parent=11 // pred_region
          _
        $region20: #{tpu_custom_call.1} parent=11 // pred_fallthru
          _
        // Predicated region
        $region21: #{tpu_custom_call.1} parent=11 // pred_check
          %p202 = pneg %p121
        $region22: #{tpu_custom_call.1} parent=11 // pred_check_branch
          %204 = sbr.rel (%p202) target = $region24
        $region23: #{tpu_custom_call.1} parent=11 // pred_region
          _
        $region24: #{tpu_custom_call.1} parent=11 // pred_fallthru
          _
      $region12: #{tpu_custom_call.1} parent=5 // pred_fallthru
        _
      %p205 = scmp.lt.s32.totalorder %s15, 2
      // Predicated region
      $region25: #{tpu_custom_call.1} parent=5 // pred_check
        %p206 = pneg %p205
      $region26: #{tpu_custom_call.1} parent=5 // pred_check_branch
        %208 = sbr.rel (%p206) target = $region28
      $region27: #{tpu_custom_call.1} parent=5 // pred_region
        // Predicated region
        $region29: #{tpu_custom_call.1} parent=27 // pred_check
          %p209 = pneg %p47
        $region30: #{tpu_custom_call.1} parent=27 // pred_check_branch
          %211 = sbr.rel (%p209) target = $region32
        $region31: #{tpu_custom_call.1} parent=27 // pred_region
          %p212 = scmp.lt.s32.totalorder %s22, 1
          %s213 = scalar_select %p212, %s22, 1
          %s214 = smul.addr %s213, 32
          %s215 = smul.addr %s214, 8
          %s216 = scalar_lea.vmem %s0, %s215
        $region32: #{tpu_custom_call.1} parent=27 // pred_fallthru
          _
      $region28: #{tpu_custom_call.1} parent=5 // pred_fallthru
        _
      %p217 = scmp.le.s32.totalorder 1, %s15
      %p218 = scmp.lt.s32.totalorder %s15, 3
      %p219 = pnand %p217, %p218
      %p220 = pneg %p219
      // Predicated region
      $region33: #{tpu_custom_call.1} parent=5 // pred_check
        _
      $region34: #{tpu_custom_call.1} parent=5 // pred_check_branch
        %222 = sbr.rel (%p219) target = $region36
      $region35: #{tpu_custom_call.1} parent=5 // pred_region
        %s223 = ssub.s32 %s15, 1
        %p224 = scmp.lt.s32.totalorder %s24, 1
        %s225 = scalar_select %p224, %s24, 1
        %s226 = smul.addr %s225, 32
        %s227 = smul.addr %s226, 8
        %s228 = scalar_lea.vmem %s0, %s227
        %p229 = pneg %p53
        %p230 = pneg %p50
        %p231 = scmp.lt.s32.totalorder %s25, 0
        %s232 = scalar_select %p231, %s25, 0
        %s233 = smul.addr %s232, 8
        %s234 = scalar_lea.vmem %s1, %s233
        %p235 = pneg %p79
        %p236 = pneg %p76
        %p237 = pneg %p100
        %p238 = pneg %p97
        %p239 = pneg %p121
        %p240 = pneg %p118
        %p241 = pneg %p149
        %p242 = pneg %p146
        %p243 = scmp.lt.s32.totalorder %s24, 1
        %s244 = scalar_select %p243, %s24, 1
        %p245 = scmp.lt.s32.totalorder %s25, 0
        %s246 = scalar_select %p245, %s25, 0
        %s247 = smul.addr %s244, 32
        %s248 = sadd.s32 %s246, %s247
        %s249 = smul.addr %s248, 8
        %s250 = scalar_lea.vmem %s4, %s249
        %p251 = pneg %p177
        %p252 = pneg %p174
        %s253 = sand.u32 %s164, 1
        %s254 = scalar_lea.sflag [#allocation5], %s253
        %s255 = sand.u32 %s164, 1
        %s256 = smul.addr %s255, 2
        %s257 = scalar_lea.vmem [#allocation4], %s256
        %p258 = scmp.lt.s32.totalorder %s24, 1
        %s259 = scalar_select %p258, %s24, 1
        %s260 = smul.addr %s259, 32
        %s261 = smul.addr %s260, 8
        %s262 = scalar_lea.vmem %s0, %s261
        %p263 = scmp.lt.s32.totalorder %s25, 0
        %s264 = scalar_select %p263, %s25, 0
        %s265 = smul.addr %s264, 8
        %s266 = scalar_lea.vmem %s1, %s265
        %p267 = scmp.lt.s32.totalorder %s24, 1
        %s268 = scalar_select %p267, %s24, 1
        %p269 = scmp.lt.s32.totalorder %s25, 0
        %s270 = scalar_select %p269, %s25, 0
        %s271 = smul.addr %s268, 32
        %s272 = sadd.s32 %s270, %s271
        %s273 = smul.addr %s272, 8
        %s274 = scalar_lea.vmem %s4, %s273
        %p275 = scmp.eq.s32.totalorder %s25, 0
        // Predicated region
        $region37: #{tpu_custom_call.1} parent=35 // pred_check
          %p276 = pneg %p275
        $region38: #{tpu_custom_call.1} parent=35 // pred_check_branch
          %278 = sbr.rel (%p276) target = $region40
        $region39: #{tpu_custom_call.1} parent=35 // pred_region
          %v279 = vld [vmem:[%s262] sm:$0xff]
          %v280 = vld [vmem:[%s262 + $0x8] sm:$0xff]
          %v281 = vld [vmem:[%s262 + $0x10] sm:$0xff]
          %v282 = vld [vmem:[%s262 + $0x18] sm:$0xff]
          %v283 = vld [vmem:[%s262 + $0x20] sm:$0xff]
          %v284 = vld [vmem:[%s262 + $0x28] sm:$0xff]
          %v285 = vld [vmem:[%s262 + $0x30] sm:$0xff]
          %v286 = vld [vmem:[%s262 + $0x38] sm:$0xff]
          %v287 = vld [vmem:[%s262 + $0x40] sm:$0xff]
          %v288 = vld [vmem:[%s262 + $0x48] sm:$0xff]
          %v289 = vld [vmem:[%s262 + $0x50] sm:$0xff]
          %v290 = vld [vmem:[%s262 + $0x58] sm:$0xff]
          %v291 = vld [vmem:[%s262 + $0x60] sm:$0xff]
          %v292 = vld [vmem:[%s262 + $0x68] sm:$0xff]
          %v293 = vld [vmem:[%s262 + $0x70] sm:$0xff]
          %v294 = vld [vmem:[%s262 + $0x78] sm:$0xff]
          %v295 = vld [vmem:[%s262 + $0x80] sm:$0xff]
          %v296 = vld [vmem:[%s262 + $0x88] sm:$0xff]
          %v297 = vld [vmem:[%s262 + $0x90] sm:$0xff]
          %v298 = vld [vmem:[%s262 + $0x98] sm:$0xff]
          %v299 = vld [vmem:[%s262 + $0xa0] sm:$0xff]
          %v300 = vld [vmem:[%s262 + $0xa8] sm:$0xff]
          %v301 = vld [vmem:[%s262 + $0xb0] sm:$0xff]
          %v302 = vld [vmem:[%s262 + $0xb8] sm:$0xff]
          %v303 = vld [vmem:[%s262 + $0xc0] sm:$0xff]
          %v304 = vld [vmem:[%s262 + $0xc8] sm:$0xff]
          %v305 = vld [vmem:[%s262 + $0xd0] sm:$0xff]
          %v306 = vld [vmem:[%s262 + $0xd8] sm:$0xff]
          %v307 = vld [vmem:[%s262 + $0xe0] sm:$0xff]
          %v308 = vld [vmem:[%s262 + $0xe8] sm:$0xff]
          %v309 = vld [vmem:[%s262 + $0xf0] sm:$0xff]
          %v310 = vld [vmem:[%s262 + $0xf8] sm:$0xff]
          %vm311 = vcmask 31744
          %312 = vst.msk [vmem:[#allocation2] sm:$0xff] %vm311, 0.0
          %313 = vst.msk [vmem:[#allocation2 + $0x8] sm:$0xff] %vm311, 0.0
          %vm314 = vcmask 25600
          %315 = vst.msk [vmem:[#allocation2 + $0x10] sm:$0x3] %vm314, 0.0
          %s316 = scalar_lea.vmem [#allocation2], 408
          %317 = vst.msk [vmem:[%s316] sm:$0xff] %vm311, 0.0
          %318 = vst.msk [vmem:[%s316 + $0x8] sm:$0xff] %vm311, 0.0
          %319 = vst.msk [vmem:[%s316 + $0x10] sm:$0x3] %vm314, 0.0
          %s320 = scalar_lea.vmem [#allocation2], 24
          %vm321 = vcmask 24576
          %322 = vst.msk [vmem:[%s320] sm:$0x1] %vm321, 0.0
          %323 = vst.msk [vmem:[%s320 + $0x18] sm:$0x1] %vm321, 0.0
          %324 = vst.msk [vmem:[%s320 + $0x30] sm:$0x1] %vm321, 0.0
          %325 = vst.msk [vmem:[%s320 + $0x48] sm:$0x1] %vm321, 0.0
          %326 = vst.msk [vmem:[%s320 + $0x60] sm:$0x1] %vm321, 0.0
          %327 = vst.msk [vmem:[%s320 + $0x78] sm:$0x1] %vm321, 0.0
          %328 = vst.msk [vmem:[%s320 + $0x90] sm:$0x1] %vm321, 0.0
          %329 = vst.msk [vmem:[%s320 + $0xa8] sm:$0x1] %vm321, 0.0
          %330 = vst.msk [vmem:[%s320 + $0xc0] sm:$0x1] %vm321, 0.0
          %331 = vst.msk [vmem:[%s320 + $0xd8] sm:$0x1] %vm321, 0.0
          %332 = vst.msk [vmem:[%s320 + $0xf0] sm:$0x1] %vm321, 0.0
          %333 = vst.msk [vmem:[%s320 + $0x108] sm:$0x1] %vm321, 0.0
          %334 = vst.msk [vmem:[%s320 + $0x120] sm:$0x1] %vm321, 0.0
          %335 = vst.msk [vmem:[%s320 + $0x138] sm:$0x1] %vm321, 0.0
          %336 = vst.msk [vmem:[%s320 + $0x150] sm:$0x1] %vm321, 0.0
          %337 = vst.msk [vmem:[%s320 + $0x168] sm:$0x1] %vm321, 0.0
          %338 = vst.msk [vmem:[%s320 + $0x11] sm:$0x1] %vm321, 0.0
          %339 = vst.msk [vmem:[%s320 + $0x29] sm:$0x1] %vm321, 0.0
          %340 = vst.msk [vmem:[%s320 + $0x41] sm:$0x1] %vm321, 0.0
          %341 = vst.msk [vmem:[%s320 + $0x59] sm:$0x1] %vm321, 0.0
          %342 = vst.msk [vmem:[%s320 + $0x71] sm:$0x1] %vm321, 0.0
          %343 = vst.msk [vmem:[%s320 + $0x89] sm:$0x1] %vm321, 0.0
          %344 = vst.msk [vmem:[%s320 + $0xa1] sm:$0x1] %vm321, 0.0
          %345 = vst.msk [vmem:[%s320 + $0xb9] sm:$0x1] %vm321, 0.0
          %346 = vst.msk [vmem:[%s320 + $0xd1] sm:$0x1] %vm321, 0.0
          %347 = vst.msk [vmem:[%s320 + $0xe9] sm:$0x1] %vm321, 0.0
          %348 = vst.msk [vmem:[%s320 + $0x101] sm:$0x1] %vm321, 0.0
          %349 = vst.msk [vmem:[%s320 + $0x119] sm:$0x1] %vm321, 0.0
          %350 = vst.msk [vmem:[%s320 + $0x131] sm:$0x1] %vm321, 0.0
          %351 = vst.msk [vmem:[%s320 + $0x149] sm:$0x1] %vm321, 0.0
          %352 = vst.msk [vmem:[%s320 + $0x161] sm:$0x1] %vm321, 0.0
          %353 = vst.msk [vmem:[%s320 + $0x179] sm:$0x1] %vm321, 0.0
          %354 = vst.msk [vmem:[%s320 + $0x1] sm:$0xff] %vm311, %v279
          %355 = vst.msk [vmem:[%s320 + $0x9] sm:$0xff] %vm311, %v280
          %356 = vst.msk [vmem:[%s320 + $0x19] sm:$0xff] %vm311, %v281
          %357 = vst.msk [vmem:[%s320 + $0x21] sm:$0xff] %vm311, %v282
          %358 = vst.msk [vmem:[%s320 + $0x31] sm:$0xff] %vm311, %v283
          %359 = vst.msk [vmem:[%s320 + $0x39] sm:$0xff] %vm311, %v284
          %360 = vst.msk [vmem:[%s320 + $0x49] sm:$0xff] %vm311, %v285
          %361 = vst.msk [vmem:[%s320 + $0x51] sm:$0xff] %vm311, %v286
          %362 = vst.msk [vmem:[%s320 + $0x61] sm:$0xff] %vm311, %v287
          %363 = vst.msk [vmem:[%s320 + $0x69] sm:$0xff] %vm311, %v288
          %364 = vst.msk [vmem:[%s320 + $0x79] sm:$0xff] %vm311, %v289
          %365 = vst.msk [vmem:[%s320 + $0x81] sm:$0xff] %vm311, %v290
          %366 = vst.msk [vmem:[%s320 + $0x91] sm:$0xff] %vm311, %v291
          %367 = vst.msk [vmem:[%s320 + $0x99] sm:$0xff] %vm311, %v292
          %368 = vst.msk [vmem:[%s320 + $0xa9] sm:$0xff] %vm311, %v293
          %369 = vst.msk [vmem:[%s320 + $0xb1] sm:$0xff] %vm311, %v294
          %370 = vst.msk [vmem:[%s320 + $0xc1] sm:$0xff] %vm311, %v295
          %371 = vst.msk [vmem:[%s320 + $0xc9] sm:$0xff] %vm311, %v296
          %372 = vst.msk [vmem:[%s320 + $0xd9] sm:$0xff] %vm311, %v297
          %373 = vst.msk [vmem:[%s320 + $0xe1] sm:$0xff] %vm311, %v298
          %374 = vst.msk [vmem:[%s320 + $0xf1] sm:$0xff] %vm311, %v299
          %375 = vst.msk [vmem:[%s320 + $0xf9] sm:$0xff] %vm311, %v300
          %376 = vst.msk [vmem:[%s320 + $0x109] sm:$0xff] %vm311, %v301
          %377 = vst.msk [vmem:[%s320 + $0x111] sm:$0xff] %vm311, %v302
          %378 = vst.msk [vmem:[%s320 + $0x121] sm:$0xff] %vm311, %v303
          %379 = vst.msk [vmem:[%s320 + $0x129] sm:$0xff] %vm311, %v304
          %380 = vst.msk [vmem:[%s320 + $0x139] sm:$0xff] %vm311, %v305
          %381 = vst.msk [vmem:[%s320 + $0x141] sm:$0xff] %vm311, %v306
          %382 = vst.msk [vmem:[%s320 + $0x151] sm:$0xff] %vm311, %v307
          %383 = vst.msk [vmem:[%s320 + $0x159] sm:$0xff] %vm311, %v308
          %384 = vst.msk [vmem:[%s320 + $0x169] sm:$0xff] %vm311, %v309
          %385 = vst.msk [vmem:[%s320 + $0x171] sm:$0xff] %vm311, %v310
          %v386 = vld [vmem:[#allocation2] sm:$0xff]
          %v387 = vld [vmem:[#allocation2 + $0x8] sm:$0xff]
          %v388 = vld [vmem:[#allocation2 + $0x10] sm:$0x3]
          %v389 = vld [vmem:[#allocation2 + $0x18] sm:$0xff]
          %v390 = vld [vmem:[#allocation2 + $0x20] sm:$0xff]
          %v391 = vld [vmem:[#allocation2 + $0x28] sm:$0x3]
          %v392 = vld [vmem:[#allocation2 + $0x30] sm:$0xff]
          %v393 = vld [vmem:[#allocation2 + $0x38] sm:$0xff]
          %v394 = vld [vmem:[#allocation2 + $0x40] sm:$0x3]
          %v395 = vld [vmem:[#allocation2 + $0x48] sm:$0xff]
          %v396 = vld [vmem:[#allocation2 + $0x50] sm:$0xff]
          %v397 = vld [vmem:[#allocation2 + $0x58] sm:$0x3]
          %v398 = vld [vmem:[#allocation2 + $0x60] sm:$0xff]
          %v399 = vld [vmem:[#allocation2 + $0x68] sm:$0xff]
          %v400 = vld [vmem:[#allocation2 + $0x70] sm:$0x3]
          %v401 = vld [vmem:[#allocation2 + $0x78] sm:$0xff]
          %v402 = vld [vmem:[#allocation2 + $0x80] sm:$0xff]
          %v403 = vld [vmem:[#allocation2 + $0x88] sm:$0x3]
          %v404 = vld [vmem:[#allocation2 + $0x90] sm:$0xff]
          %v405 = vld [vmem:[#allocation2 + $0x98] sm:$0xff]
          %v406 = vld [vmem:[#allocation2 + $0xa0] sm:$0x3]
          %v407 = vld [vmem:[#allocation2 + $0xa8] sm:$0xff]
          %v408 = vld [vmem:[#allocation2 + $0xb0] sm:$0xff]
          %v409 = vld [vmem:[#allocation2 + $0xb8] sm:$0x3]
          %v410 = vld [vmem:[#allocation2 + $0xc0] sm:$0xff]
          %v411 = vld [vmem:[#allocation2 + $0xc8] sm:$0xff]
          %v412 = vld [vmem:[#allocation2 + $0xd0] sm:$0x3]
          %v413 = vld [vmem:[#allocation2 + $0xd8] sm:$0xff]
          %v414 = vld [vmem:[#allocation2 + $0xe0] sm:$0xff]
          %v415 = vld [vmem:[#allocation2 + $0xe8] sm:$0x3]
          %v416 = vld [vmem:[#allocation2 + $0xf0] sm:$0xff]
          %v417 = vld [vmem:[#allocation2 + $0xf8] sm:$0xff]
          %v418 = vld [vmem:[#allocation2 + $0x100] sm:$0x3]
          %v419 = vld [vmem:[#allocation2 + $0x108] sm:$0xff]
          %v420 = vld [vmem:[#allocation2 + $0x110] sm:$0xff]
          %v421 = vld [vmem:[#allocation2 + $0x118] sm:$0x3]
          %v422 = vld [vmem:[#allocation2 + $0x120] sm:$0xff]
          %v423 = vld [vmem:[#allocation2 + $0x128] sm:$0xff]
          %v424 = vld [vmem:[#allocation2 + $0x130] sm:$0x3]
          %v425 = vld [vmem:[#allocation2 + $0x138] sm:$0xff]
          %v426 = vld [vmem:[#allocation2 + $0x140] sm:$0xff]
          %v427 = vld [vmem:[#allocation2 + $0x148] sm:$0x3]
          %v428 = vld [vmem:[#allocation2 + $0x150] sm:$0xff]
          %v429 = vld [vmem:[#allocation2 + $0x158] sm:$0xff]
          %v430 = vld [vmem:[#allocation2 + $0x160] sm:$0x3]
          %v431 = vld [vmem:[#allocation2 + $0x168] sm:$0xff]
          %v432 = vld [vmem:[#allocation2 + $0x170] sm:$0xff]
          %v433 = vld [vmem:[#allocation2 + $0x178] sm:$0x3]
          %v434 = vld [vmem:[#allocation2 + $0x180] sm:$0xff]
          %v435 = vld [vmem:[#allocation2 + $0x188] sm:$0xff]
          %v436 = vld [vmem:[#allocation2 + $0x190] sm:$0x3]
          %v437 = vld [vmem:[#allocation2 + $0x198] sm:$0xff]
          %v438 = vld [vmem:[#allocation2 + $0x1a0] sm:$0xff]
          %v439 = vld [vmem:[#allocation2 + $0x1a8] sm:$0x3]
          %440 = vst.msk [vmem:[#allocation3] sm:$0xff] %vm311, %v386
          %441 = vst.msk [vmem:[#allocation3 + $0x8] sm:$0xff] %vm311, %v387
          %442 = vst.msk [vmem:[#allocation3 + $0x10] sm:$0xff] %vm311, %v389
          %443 = vst.msk [vmem:[#allocation3 + $0x18] sm:$0xff] %vm311, %v390
          %444 = vst.msk [vmem:[#allocation3 + $0x20] sm:$0xff] %vm311, %v392
          %445 = vst.msk [vmem:[#allocation3 + $0x28] sm:$0xff] %vm311, %v393
          %446 = vst.msk [vmem:[#allocation3 + $0x30] sm:$0xff] %vm311, %v395
          %447 = vst.msk [vmem:[#allocation3 + $0x38] sm:$0xff] %vm311, %v396
          %448 = vst.msk [vmem:[#allocation3 + $0x40] sm:$0xff] %vm311, %v398
          %449 = vst.msk [vmem:[#allocation3 + $0x48] sm:$0xff] %vm311, %v399
          %450 = vst.msk [vmem:[#allocation3 + $0x50] sm:$0xff] %vm311, %v401
          %451 = vst.msk [vmem:[#allocation3 + $0x58] sm:$0xff] %vm311, %v402
          %452 = vst.msk [vmem:[#allocation3 + $0x60] sm:$0xff] %vm311, %v404
          %453 = vst.msk [vmem:[#allocation3 + $0x68] sm:$0xff] %vm311, %v405
          %454 = vst.msk [vmem:[#allocation3 + $0x70] sm:$0xff] %vm311, %v407
          %455 = vst.msk [vmem:[#allocation3 + $0x78] sm:$0xff] %vm311, %v408
          %456 = vst.msk [vmem:[#allocation3 + $0x80] sm:$0xff] %vm311, %v410
          %457 = vst.msk [vmem:[#allocation3 + $0x88] sm:$0xff] %vm311, %v411
          %458 = vst.msk [vmem:[#allocation3 + $0x90] sm:$0xff] %vm311, %v413
          %459 = vst.msk [vmem:[#allocation3 + $0x98] sm:$0xff] %vm311, %v414
          %460 = vst.msk [vmem:[#allocation3 + $0xa0] sm:$0xff] %vm311, %v416
          %461 = vst.msk [vmem:[#allocation3 + $0xa8] sm:$0xff] %vm311, %v417
          %462 = vst.msk [vmem:[#allocation3 + $0xb0] sm:$0xff] %vm311, %v419
          %463 = vst.msk [vmem:[#allocation3 + $0xb8] sm:$0xff] %vm311, %v420
          %464 = vst.msk [vmem:[#allocation3 + $0xc0] sm:$0xff] %vm311, %v422
          %465 = vst.msk [vmem:[#allocation3 + $0xc8] sm:$0xff] %vm311, %v423
          %466 = vst.msk [vmem:[#allocation3 + $0xd0] sm:$0xff] %vm311, %v425
          %467 = vst.msk [vmem:[#allocation3 + $0xd8] sm:$0xff] %vm311, %v426
          %468 = vst.msk [vmem:[#allocation3 + $0xe0] sm:$0xff] %vm311, %v428
          %469 = vst.msk [vmem:[#allocation3 + $0xe8] sm:$0xff] %vm311, %v429
          %470 = vst.msk [vmem:[#allocation3 + $0xf0] sm:$0xff] %vm311, %v431
          %471 = vst.msk [vmem:[#allocation3 + $0xf8] sm:$0xff] %vm311, %v432
          %520 = vrot.lane.b32.xlu0 %v386, 4
          %v521 = vpop.permute.xlu0 %520
          %522 = vrot.lane.b32.xlu0 %v387, 4
          %v523 = vpop.permute.xlu0 %522
          %524 = vrot.lane.b32.xlu0 %v388, 4
          %v525 = vpop.permute.xlu0 %524
          %526 = vrot.lane.b32.xlu0 %v389, 4
          %v527 = vpop.permute.xlu0 %526
          %528 = vrot.lane.b32.xlu0 %v390, 4
          %v529 = vpop.permute.xlu0 %528
          %530 = vrot.lane.b32.xlu0 %v391, 4
          %v531 = vpop.permute.xlu0 %530
          %532 = vrot.lane.b32.xlu0 %v392, 4
          %v533 = vpop.permute.xlu0 %532
          %534 = vrot.lane.b32.xlu0 %v393, 4
          %v535 = vpop.permute.xlu0 %534
          %536 = vrot.lane.b32.xlu0 %v394, 4
          %v537 = vpop.permute.xlu0 %536
          %538 = vrot.lane.b32.xlu0 %v395, 4
          %v539 = vpop.permute.xlu0 %538
          %540 = vrot.lane.b32.xlu0 %v396, 4
          %v541 = vpop.permute.xlu0 %540
          %542 = vrot.lane.b32.xlu0 %v397, 4
          %v543 = vpop.permute.xlu0 %542
          %544 = vrot.lane.b32.xlu0 %v398, 4
          %v545 = vpop.permute.xlu0 %544
          %546 = vrot.lane.b32.xlu0 %v399, 4
          %v547 = vpop.permute.xlu0 %546
          %548 = vrot.lane.b32.xlu0 %v400, 4
          %v549 = vpop.permute.xlu0 %548
          %550 = vrot.lane.b32.xlu0 %v401, 4
          %v551 = vpop.permute.xlu0 %550
          %552 = vrot.lane.b32.xlu0 %v402, 4
          %v553 = vpop.permute.xlu0 %552
          %554 = vrot.lane.b32.xlu0 %v403, 4
          %v555 = vpop.permute.xlu0 %554
          %556 = vrot.lane.b32.xlu0 %v404, 4
          %v557 = vpop.permute.xlu0 %556
          %558 = vrot.lane.b32.xlu0 %v405, 4
          %v559 = vpop.permute.xlu0 %558
          %560 = vrot.lane.b32.xlu0 %v406, 4
          %v561 = vpop.permute.xlu0 %560
          %562 = vrot.lane.b32.xlu0 %v407, 4
          %v563 = vpop.permute.xlu0 %562
          %564 = vrot.lane.b32.xlu0 %v408, 4
          %v565 = vpop.permute.xlu0 %564
          %566 = vrot.lane.b32.xlu0 %v409, 4
          %v567 = vpop.permute.xlu0 %566
          %568 = vrot.lane.b32.xlu0 %v410, 4
          %v569 = vpop.permute.xlu0 %568
          %570 = vrot.lane.b32.xlu0 %v411, 4
          %v571 = vpop.permute.xlu0 %570
          %572 = vrot.lane.b32.xlu0 %v412, 4
          %v573 = vpop.permute.xlu0 %572
          %574 = vrot.lane.b32.xlu0 %v413, 4
          %v575 = vpop.permute.xlu0 %574
          %576 = vrot.lane.b32.xlu0 %v414, 4
          %v577 = vpop.permute.xlu0 %576
          %578 = vrot.lane.b32.xlu0 %v415, 4
          %v579 = vpop.permute.xlu0 %578
          %580 = vrot.lane.b32.xlu0 %v416, 4
          %v581 = vpop.permute.xlu0 %580
          %582 = vrot.lane.b32.xlu0 %v417, 4
          %v583 = vpop.permute.xlu0 %582
          %584 = vrot.lane.b32.xlu0 %v418, 4
          %v585 = vpop.permute.xlu0 %584
          %586 = vrot.lane.b32.xlu0 %v419, 4
          %v587 = vpop.permute.xlu0 %586
          %588 = vrot.lane.b32.xlu0 %v420, 4
          %v589 = vpop.permute.xlu0 %588
          %590 = vrot.lane.b32.xlu0 %v421, 4
          %v591 = vpop.permute.xlu0 %590
          %592 = vrot.lane.b32.xlu0 %v422, 4
          %v593 = vpop.permute.xlu0 %592
          %594 = vrot.lane.b32.xlu0 %v423, 4
          %v595 = vpop.permute.xlu0 %594
          %596 = vrot.lane.b32.xlu0 %v424, 4
          %v597 = vpop.permute.xlu0 %596
          %598 = vrot.lane.b32.xlu0 %v425, 4
          %v599 = vpop.permute.xlu0 %598
          %600 = vrot.lane.b32.xlu0 %v426, 4
          %v601 = vpop.permute.xlu0 %600
          %602 = vrot.lane.b32.xlu0 %v427, 4
          %v603 = vpop.permute.xlu0 %602
          %604 = vrot.lane.b32.xlu0 %v428, 4
          %v605 = vpop.permute.xlu0 %604
          %606 = vrot.lane.b32.xlu0 %v429, 4
          %v607 = vpop.permute.xlu0 %606
          %608 = vrot.lane.b32.xlu0 %v430, 4
          %v609 = vpop.permute.xlu0 %608
          %610 = vrot.lane.b32.xlu0 %v431, 4
          %v611 = vpop.permute.xlu0 %610
          %612 = vrot.lane.b32.xlu0 %v432, 4
          %v613 = vpop.permute.xlu0 %612
          %614 = vrot.lane.b32.xlu0 %v433, 4
          %v615 = vpop.permute.xlu0 %614
          %vm664 = vcmask 64545
          %665 = vst.msk [vmem:[#allocation3 - $0x1] sm:$0xfe] %vm664, %v521
          %vm666 = vcmask 64544
          %667 = vst.msk [vmem:[#allocation3 + $0x7] sm:$0xff] %vm666, %v523
          %vm668 = vcmask 57376
          %669 = vst.msk [vmem:[#allocation3 + $0xf] sm:$0x1] %vm668, %v525
          %670 = vst.msk [vmem:[#allocation3 + $0xf] sm:$0xfe] %vm664, %v527
          %671 = vst.msk [vmem:[#allocation3 + $0x17] sm:$0xff] %vm666, %v529
          %672 = vst.msk [vmem:[#allocation3 + $0x1f] sm:$0x1] %vm668, %v531
          %673 = vst.msk [vmem:[#allocation3 + $0x1f] sm:$0xfe] %vm664, %v533
          %674 = vst.msk [vmem:[#allocation3 + $0x27] sm:$0xff] %vm666, %v535
          %675 = vst.msk [vmem:[#allocation3 + $0x2f] sm:$0x1] %vm668, %v537
          %676 = vst.msk [vmem:[#allocation3 + $0x2f] sm:$0xfe] %vm664, %v539
          %677 = vst.msk [vmem:[#allocation3 + $0x37] sm:$0xff] %vm666, %v541
          %678 = vst.msk [vmem:[#allocation3 + $0x3f] sm:$0x1] %vm668, %v543
          %679 = vst.msk [vmem:[#allocation3 + $0x3f] sm:$0xfe] %vm664, %v545
          %680 = vst.msk [vmem:[#allocation3 + $0x47] sm:$0xff] %vm666, %v547
          %681 = vst.msk [vmem:[#allocation3 + $0x4f] sm:$0x1] %vm668, %v549
          %682 = vst.msk [vmem:[#allocation3 + $0x4f] sm:$0xfe] %vm664, %v551
          %683 = vst.msk [vmem:[#allocation3 + $0x57] sm:$0xff] %vm666, %v553
          %684 = vst.msk [vmem:[#allocation3 + $0x5f] sm:$0x1] %vm668, %v555
          %685 = vst.msk [vmem:[#allocation3 + $0x5f] sm:$0xfe] %vm664, %v557
          %686 = vst.msk [vmem:[#allocation3 + $0x67] sm:$0xff] %vm666, %v559
          %687 = vst.msk [vmem:[#allocation3 + $0x6f] sm:$0x1] %vm668, %v561
          %688 = vst.msk [vmem:[#allocation3 + $0x6f] sm:$0xfe] %vm664, %v563
          %689 = vst.msk [vmem:[#allocation3 + $0x77] sm:$0xff] %vm666, %v565
          %690 = vst.msk [vmem:[#allocation3 + $0x7f] sm:$0x1] %vm668, %v567
          %691 = vst.msk [vmem:[#allocation3 + $0x7f] sm:$0xfe] %vm664, %v569
          %692 = vst.msk [vmem:[#allocation3 + $0x87] sm:$0xff] %vm666, %v571
          %693 = vst.msk [vmem:[#allocation3 + $0x8f] sm:$0x1] %vm668, %v573
          %694 = vst.msk [vmem:[#allocation3 + $0x8f] sm:$0xfe] %vm664, %v575
          %695 = vst.msk [vmem:[#allocation3 + $0x97] sm:$0xff] %vm666, %v577
          %696 = vst.msk [vmem:[#allocation3 + $0x9f] sm:$0x1] %vm668, %v579
          %697 = vst.msk [vmem:[#allocation3 + $0x9f] sm:$0xfe] %vm664, %v581
          %698 = vst.msk [vmem:[#allocation3 + $0xa7] sm:$0xff] %vm666, %v583
          %699 = vst.msk [vmem:[#allocation3 + $0xaf] sm:$0x1] %vm668, %v585
          %700 = vst.msk [vmem:[#allocation3 + $0xaf] sm:$0xfe] %vm664, %v587
          %701 = vst.msk [vmem:[#allocation3 + $0xb7] sm:$0xff] %vm666, %v589
          %702 = vst.msk [vmem:[#allocation3 + $0xbf] sm:$0x1] %vm668, %v591
          %703 = vst.msk [vmem:[#allocation3 + $0xbf] sm:$0xfe] %vm664, %v593
          %704 = vst.msk [vmem:[#allocation3 + $0xc7] sm:$0xff] %vm666, %v595
          %705 = vst.msk [vmem:[#allocation3 + $0xcf] sm:$0x1] %vm668, %v597
          %706 = vst.msk [vmem:[#allocation3 + $0xcf] sm:$0xfe] %vm664, %v599
          %707 = vst.msk [vmem:[#allocation3 + $0xd7] sm:$0xff] %vm666, %v601
          %708 = vst.msk [vmem:[#allocation3 + $0xdf] sm:$0x1] %vm668, %v603
          %709 = vst.msk [vmem:[#allocation3 + $0xdf] sm:$0xfe] %vm664, %v605
          %710 = vst.msk [vmem:[#allocation3 + $0xe7] sm:$0xff] %vm666, %v607
          %711 = vst.msk [vmem:[#allocation3 + $0xef] sm:$0x1] %vm668, %v609
          %712 = vst.msk [vmem:[#allocation3 + $0xef] sm:$0xfe] %vm664, %v611
          %713 = vst.msk [vmem:[#allocation3 + $0xf7] sm:$0xff] %vm666, %v613
          %714 = vst.msk [vmem:[#allocation3 + $0xff] sm:$0x1] %vm668, %v615
          %715 = vrot.lane.b32.xlu0 %v386, 8
          %v716 = vpop.permute.xlu0 %715
          %717 = vrot.lane.b32.xlu0 %v387, 8
          %v718 = vpop.permute.xlu0 %717
          %719 = vrot.lane.b32.xlu0 %v388, 8
          %v720 = vpop.permute.xlu0 %719
          %721 = vrot.lane.b32.xlu0 %v389, 8
          %v722 = vpop.permute.xlu0 %721
          %723 = vrot.lane.b32.xlu0 %v390, 8
          %v724 = vpop.permute.xlu0 %723
          %725 = vrot.lane.b32.xlu0 %v391, 8
          %v726 = vpop.permute.xlu0 %725
          %727 = vrot.lane.b32.xlu0 %v392, 8
          %v728 = vpop.permute.xlu0 %727
          %729 = vrot.lane.b32.xlu0 %v393, 8
          %v730 = vpop.permute.xlu0 %729
          %731 = vrot.lane.b32.xlu0 %v394, 8
          %v732 = vpop.permute.xlu0 %731
          %733 = vrot.lane.b32.xlu0 %v395, 8
          %v734 = vpop.permute.xlu0 %733
          %735 = vrot.lane.b32.xlu0 %v396, 8
          %v736 = vpop.permute.xlu0 %735
          %737 = vrot.lane.b32.xlu0 %v397, 8
          %v738 = vpop.permute.xlu0 %737
          %739 = vrot.lane.b32.xlu0 %v398, 8
          %v740 = vpop.permute.xlu0 %739
          %741 = vrot.lane.b32.xlu0 %v399, 8
          %v742 = vpop.permute.xlu0 %741
          %743 = vrot.lane.b32.xlu0 %v400, 8
          %v744 = vpop.permute.xlu0 %743
          %745 = vrot.lane.b32.xlu0 %v401, 8
          %v746 = vpop.permute.xlu0 %745
          %747 = vrot.lane.b32.xlu0 %v402, 8
          %v748 = vpop.permute.xlu0 %747
          %749 = vrot.lane.b32.xlu0 %v403, 8
          %v750 = vpop.permute.xlu0 %749
          %751 = vrot.lane.b32.xlu0 %v404, 8
          %v752 = vpop.permute.xlu0 %751
          %753 = vrot.lane.b32.xlu0 %v405, 8
          %v754 = vpop.permute.xlu0 %753
          %755 = vrot.lane.b32.xlu0 %v406, 8
          %v756 = vpop.permute.xlu0 %755
          %757 = vrot.lane.b32.xlu0 %v407, 8
          %v758 = vpop.permute.xlu0 %757
          %759 = vrot.lane.b32.xlu0 %v408, 8
          %v760 = vpop.permute.xlu0 %759
          %761 = vrot.lane.b32.xlu0 %v409, 8
          %v762 = vpop.permute.xlu0 %761
          %763 = vrot.lane.b32.xlu0 %v410, 8
          %v764 = vpop.permute.xlu0 %763
          %765 = vrot.lane.b32.xlu0 %v411, 8
          %v766 = vpop.permute.xlu0 %765
          %767 = vrot.lane.b32.xlu0 %v412, 8
          %v768 = vpop.permute.xlu0 %767
          %769 = vrot.lane.b32.xlu0 %v413, 8
          %v770 = vpop.permute.xlu0 %769
          %771 = vrot.lane.b32.xlu0 %v414, 8
          %v772 = vpop.permute.xlu0 %771
          %773 = vrot.lane.b32.xlu0 %v415, 8
          %v774 = vpop.permute.xlu0 %773
          %775 = vrot.lane.b32.xlu0 %v416, 8
          %v776 = vpop.permute.xlu0 %775
          %777 = vrot.lane.b32.xlu0 %v417, 8
          %v778 = vpop.permute.xlu0 %777
          %779 = vrot.lane.b32.xlu0 %v418, 8
          %v780 = vpop.permute.xlu0 %779
          %781 = vrot.lane.b32.xlu0 %v419, 8
          %v782 = vpop.permute.xlu0 %781
          %783 = vrot.lane.b32.xlu0 %v420, 8
          %v784 = vpop.permute.xlu0 %783
          %785 = vrot.lane.b32.xlu0 %v421, 8
          %v786 = vpop.permute.xlu0 %785
          %787 = vrot.lane.b32.xlu0 %v422, 8
          %v788 = vpop.permute.xlu0 %787
          %789 = vrot.lane.b32.xlu0 %v423, 8
          %v790 = vpop.permute.xlu0 %789
          %791 = vrot.lane.b32.xlu0 %v424, 8
          %v792 = vpop.permute.xlu0 %791
          %793 = vrot.lane.b32.xlu0 %v425, 8
          %v794 = vpop.permute.xlu0 %793
          %795 = vrot.lane.b32.xlu0 %v426, 8
          %v796 = vpop.permute.xlu0 %795
          %797 = vrot.lane.b32.xlu0 %v427, 8
          %v798 = vpop.permute.xlu0 %797
          %799 = vrot.lane.b32.xlu0 %v428, 8
          %v800 = vpop.permute.xlu0 %799
          %801 = vrot.lane.b32.xlu0 %v429, 8
          %v802 = vpop.permute.xlu0 %801
          %803 = vrot.lane.b32.xlu0 %v430, 8
          %v804 = vpop.permute.xlu0 %803
          %805 = vrot.lane.b32.xlu0 %v431, 8
          %v806 = vpop.permute.xlu0 %805
          %807 = vrot.lane.b32.xlu0 %v432, 8
          %v808 = vpop.permute.xlu0 %807
          %809 = vrot.lane.b32.xlu0 %v433, 8
          %v810 = vpop.permute.xlu0 %809
          %vm859 = vcmask 97346
          %860 = vst.msk [vmem:[#allocation3 - $0x2] sm:$0xfc] %vm859, %v716
          %vm861 = vcmask 97344
          %862 = vst.msk [vmem:[#allocation3 + $0x6] sm:$0xff] %vm861, %v718
          %vm863 = vcmask 91200
          %864 = vst.msk [vmem:[#allocation3 + $0xe] sm:$0x3] %vm863, %v720
          %865 = vst.msk [vmem:[#allocation3 + $0xe] sm:$0xfc] %vm859, %v722
          %866 = vst.msk [vmem:[#allocation3 + $0x16] sm:$0xff] %vm861, %v724
          %867 = vst.msk [vmem:[#allocation3 + $0x1e] sm:$0x3] %vm863, %v726
          %868 = vst.msk [vmem:[#allocation3 + $0x1e] sm:$0xfc] %vm859, %v728
          %869 = vst.msk [vmem:[#allocation3 + $0x26] sm:$0xff] %vm861, %v730
          %870 = vst.msk [vmem:[#allocation3 + $0x2e] sm:$0x3] %vm863, %v732
          %871 = vst.msk [vmem:[#allocation3 + $0x2e] sm:$0xfc] %vm859, %v734
          %872 = vst.msk [vmem:[#allocation3 + $0x36] sm:$0xff] %vm861, %v736
          %873 = vst.msk [vmem:[#allocation3 + $0x3e] sm:$0x3] %vm863, %v738
          %874 = vst.msk [vmem:[#allocation3 + $0x3e] sm:$0xfc] %vm859, %v740
          %875 = vst.msk [vmem:[#allocation3 + $0x46] sm:$0xff] %vm861, %v742
          %876 = vst.msk [vmem:[#allocation3 + $0x4e] sm:$0x3] %vm863, %v744
          %877 = vst.msk [vmem:[#allocation3 + $0x4e] sm:$0xfc] %vm859, %v746
          %878 = vst.msk [vmem:[#allocation3 + $0x56] sm:$0xff] %vm861, %v748
          %879 = vst.msk [vmem:[#allocation3 + $0x5e] sm:$0x3] %vm863, %v750
          %880 = vst.msk [vmem:[#allocation3 + $0x5e] sm:$0xfc] %vm859, %v752
          %881 = vst.msk [vmem:[#allocation3 + $0x66] sm:$0xff] %vm861, %v754
          %882 = vst.msk [vmem:[#allocation3 + $0x6e] sm:$0x3] %vm863, %v756
          %883 = vst.msk [vmem:[#allocation3 + $0x6e] sm:$0xfc] %vm859, %v758
          %884 = vst.msk [vmem:[#allocation3 + $0x76] sm:$0xff] %vm861, %v760
          %885 = vst.msk [vmem:[#allocation3 + $0x7e] sm:$0x3] %vm863, %v762
          %886 = vst.msk [vmem:[#allocation3 + $0x7e] sm:$0xfc] %vm859, %v764
          %887 = vst.msk [vmem:[#allocation3 + $0x86] sm:$0xff] %vm861, %v766
          %888 = vst.msk [vmem:[#allocation3 + $0x8e] sm:$0x3] %vm863, %v768
          %889 = vst.msk [vmem:[#allocation3 + $0x8e] sm:$0xfc] %vm859, %v770
          %890 = vst.msk [vmem:[#allocation3 + $0x96] sm:$0xff] %vm861, %v772
          %891 = vst.msk [vmem:[#allocation3 + $0x9e] sm:$0x3] %vm863, %v774
          %892 = vst.msk [vmem:[#allocation3 + $0x9e] sm:$0xfc] %vm859, %v776
          %893 = vst.msk [vmem:[#allocation3 + $0xa6] sm:$0xff] %vm861, %v778
          %894 = vst.msk [vmem:[#allocation3 + $0xae] sm:$0x3] %vm863, %v780
          %895 = vst.msk [vmem:[#allocation3 + $0xae] sm:$0xfc] %vm859, %v782
          %896 = vst.msk [vmem:[#allocation3 + $0xb6] sm:$0xff] %vm861, %v784
          %897 = vst.msk [vmem:[#allocation3 + $0xbe] sm:$0x3] %vm863, %v786
          %898 = vst.msk [vmem:[#allocation3 + $0xbe] sm:$0xfc] %vm859, %v788
          %899 = vst.msk [vmem:[#allocation3 + $0xc6] sm:$0xff] %vm861, %v790
          %900 = vst.msk [vmem:[#allocation3 + $0xce] sm:$0x3] %vm863, %v792
          %901 = vst.msk [vmem:[#allocation3 + $0xce] sm:$0xfc] %vm859, %v794
          %902 = vst.msk [vmem:[#allocation3 + $0xd6] sm:$0xff] %vm861, %v796
          %903 = vst.msk [vmem:[#allocation3 + $0xde] sm:$0x3] %vm863, %v798
          %904 = vst.msk [vmem:[#allocation3 + $0xde] sm:$0xfc] %vm859, %v800
          %905 = vst.msk [vmem:[#allocation3 + $0xe6] sm:$0xff] %vm861, %v802
          %906 = vst.msk [vmem:[#allocation3 + $0xee] sm:$0x3] %vm863, %v804
          %907 = vst.msk [vmem:[#allocation3 + $0xee] sm:$0xfc] %vm859, %v806
          %908 = vst.msk [vmem:[#allocation3 + $0xf6] sm:$0xff] %vm861, %v808
          %909 = vst.msk [vmem:[#allocation3 + $0xfe] sm:$0x3] %vm863, %v810
          %912 = vrot.lane.b32.xlu0 %v389, 12
          %v913 = vpop.permute.xlu0 %912
          %914 = vrot.lane.b32.xlu0 %v390, 12
          %v915 = vpop.permute.xlu0 %914
          %916 = vrot.lane.b32.xlu0 %v392, 12
          %v917 = vpop.permute.xlu0 %916
          %918 = vrot.lane.b32.xlu0 %v393, 12
          %v919 = vpop.permute.xlu0 %918
          %920 = vrot.lane.b32.xlu0 %v395, 12
          %v921 = vpop.permute.xlu0 %920
          %922 = vrot.lane.b32.xlu0 %v396, 12
          %v923 = vpop.permute.xlu0 %922
          %924 = vrot.lane.b32.xlu0 %v398, 12
          %v925 = vpop.permute.xlu0 %924
          %926 = vrot.lane.b32.xlu0 %v399, 12
          %v927 = vpop.permute.xlu0 %926
          %928 = vrot.lane.b32.xlu0 %v401, 12
          %v929 = vpop.permute.xlu0 %928
          %930 = vrot.lane.b32.xlu0 %v402, 12
          %v931 = vpop.permute.xlu0 %930
          %932 = vrot.lane.b32.xlu0 %v404, 12
          %v933 = vpop.permute.xlu0 %932
          %934 = vrot.lane.b32.xlu0 %v405, 12
          %v935 = vpop.permute.xlu0 %934
          %936 = vrot.lane.b32.xlu0 %v407, 12
          %v937 = vpop.permute.xlu0 %936
          %938 = vrot.lane.b32.xlu0 %v408, 12
          %v939 = vpop.permute.xlu0 %938
          %940 = vrot.lane.b32.xlu0 %v410, 12
          %v941 = vpop.permute.xlu0 %940
          %942 = vrot.lane.b32.xlu0 %v411, 12
          %v943 = vpop.permute.xlu0 %942
          %944 = vrot.lane.b32.xlu0 %v413, 12
          %v945 = vpop.permute.xlu0 %944
          %946 = vrot.lane.b32.xlu0 %v414, 12
          %v947 = vpop.permute.xlu0 %946
          %948 = vrot.lane.b32.xlu0 %v416, 12
          %v949 = vpop.permute.xlu0 %948
          %950 = vrot.lane.b32.xlu0 %v417, 12
          %v951 = vpop.permute.xlu0 %950
          %952 = vrot.lane.b32.xlu0 %v419, 12
          %v953 = vpop.permute.xlu0 %952
          %954 = vrot.lane.b32.xlu0 %v420, 12
          %v955 = vpop.permute.xlu0 %954
          %956 = vrot.lane.b32.xlu0 %v422, 12
          %v957 = vpop.permute.xlu0 %956
          %958 = vrot.lane.b32.xlu0 %v423, 12
          %v959 = vpop.permute.xlu0 %958
          %960 = vrot.lane.b32.xlu0 %v425, 12
          %v961 = vpop.permute.xlu0 %960
          %962 = vrot.lane.b32.xlu0 %v426, 12
          %v963 = vpop.permute.xlu0 %962
          %964 = vrot.lane.b32.xlu0 %v428, 12
          %v965 = vpop.permute.xlu0 %964
          %966 = vrot.lane.b32.xlu0 %v429, 12
          %v967 = vpop.permute.xlu0 %966
          %968 = vrot.lane.b32.xlu0 %v431, 12
          %v969 = vpop.permute.xlu0 %968
          %970 = vrot.lane.b32.xlu0 %v432, 12
          %v971 = vpop.permute.xlu0 %970
          %972 = vrot.lane.b32.xlu0 %v434, 12
          %v973 = vpop.permute.xlu0 %972
          %974 = vrot.lane.b32.xlu0 %v435, 12
          %v975 = vpop.permute.xlu0 %974
          %vm1008 = vcmask 130144
          %1009 = vst.msk [vmem:[#allocation3] sm:$0xff] %vm1008, %v913
          %1010 = vst.msk [vmem:[#allocation3 + $0x8] sm:$0xff] %vm1008, %v915
          %1011 = vst.msk [vmem:[#allocation3 + $0x10] sm:$0xff] %vm1008, %v917
          %1012 = vst.msk [vmem:[#allocation3 + $0x18] sm:$0xff] %vm1008, %v919
          %1013 = vst.msk [vmem:[#allocation3 + $0x20] sm:$0xff] %vm1008, %v921
          %1014 = vst.msk [vmem:[#allocation3 + $0x28] sm:$0xff] %vm1008, %v923
          %1015 = vst.msk [vmem:[#allocation3 + $0x30] sm:$0xff] %vm1008, %v925
          %1016 = vst.msk [vmem:[#allocation3 + $0x38] sm:$0xff] %vm1008, %v927
          %1017 = vst.msk [vmem:[#allocation3 + $0x40] sm:$0xff] %vm1008, %v929
          %1018 = vst.msk [vmem:[#allocation3 + $0x48] sm:$0xff] %vm1008, %v931
          %1019 = vst.msk [vmem:[#allocation3 + $0x50] sm:$0xff] %vm1008, %v933
          %1020 = vst.msk [vmem:[#allocation3 + $0x58] sm:$0xff] %vm1008, %v935
          %1021 = vst.msk [vmem:[#allocation3 + $0x60] sm:$0xff] %vm1008, %v937
          %1022 = vst.msk [vmem:[#allocation3 + $0x68] sm:$0xff] %vm1008, %v939
          %1023 = vst.msk [vmem:[#allocation3 + $0x70] sm:$0xff] %vm1008, %v941
          %1024 = vst.msk [vmem:[#allocation3 + $0x78] sm:$0xff] %vm1008, %v943
          %1025 = vst.msk [vmem:[#allocation3 + $0x80] sm:$0xff] %vm1008, %v945
          %1026 = vst.msk [vmem:[#allocation3 + $0x88] sm:$0xff] %vm1008, %v947
          %1027 = vst.msk [vmem:[#allocation3 + $0x90] sm:$0xff] %vm1008, %v949
          %1028 = vst.msk [vmem:[#allocation3 + $0x98] sm:$0xff] %vm1008, %v951
          %1029 = vst.msk [vmem:[#allocation3 + $0xa0] sm:$0xff] %vm1008, %v953
          %1030 = vst.msk [vmem:[#allocation3 + $0xa8] sm:$0xff] %vm1008, %v955
          %1031 = vst.msk [vmem:[#allocation3 + $0xb0] sm:$0xff] %vm1008, %v957
          %1032 = vst.msk [vmem:[#allocation3 + $0xb8] sm:$0xff] %vm1008, %v959
          %1033 = vst.msk [vmem:[#allocation3 + $0xc0] sm:$0xff] %vm1008, %v961
          %1034 = vst.msk [vmem:[#allocation3 + $0xc8] sm:$0xff] %vm1008, %v963
          %1035 = vst.msk [vmem:[#allocation3 + $0xd0] sm:$0xff] %vm1008, %v965
          %1036 = vst.msk [vmem:[#allocation3 + $0xd8] sm:$0xff] %vm1008, %v967
          %1037 = vst.msk [vmem:[#allocation3 + $0xe0] sm:$0xff] %vm1008, %v969
          %1038 = vst.msk [vmem:[#allocation3 + $0xe8] sm:$0xff] %vm1008, %v971
          %1039 = vst.msk [vmem:[#allocation3 + $0xf0] sm:$0xff] %vm1008, %v973
          %1040 = vst.msk [vmem:[#allocation3 + $0xf8] sm:$0xff] %vm1008, %v975
          %1042 = vrot.lane.b32.xlu0 %v389, 16
          %v1043 = vpop.permute.xlu0 %1042
          %1044 = vrot.lane.b32.xlu0 %v390, 16
          %v1045 = vpop.permute.xlu0 %1044
          %1046 = vrot.lane.b32.xlu0 %v391, 16
          %v1047 = vpop.permute.xlu0 %1046
          %1048 = vrot.lane.b32.xlu0 %v392, 16
          %v1049 = vpop.permute.xlu0 %1048
          %1050 = vrot.lane.b32.xlu0 %v393, 16
          %v1051 = vpop.permute.xlu0 %1050
          %1052 = vrot.lane.b32.xlu0 %v394, 16
          %v1053 = vpop.permute.xlu0 %1052
          %1054 = vrot.lane.b32.xlu0 %v395, 16
          %v1055 = vpop.permute.xlu0 %1054
          %1056 = vrot.lane.b32.xlu0 %v396, 16
          %v1057 = vpop.permute.xlu0 %1056
          %1058 = vrot.lane.b32.xlu0 %v397, 16
          %v1059 = vpop.permute.xlu0 %1058
          %1060 = vrot.lane.b32.xlu0 %v398, 16
          %v1061 = vpop.permute.xlu0 %1060
          %1062 = vrot.lane.b32.xlu0 %v399, 16
          %v1063 = vpop.permute.xlu0 %1062
          %1064 = vrot.lane.b32.xlu0 %v400, 16
          %v1065 = vpop.permute.xlu0 %1064
          %1066 = vrot.lane.b32.xlu0 %v401, 16
          %v1067 = vpop.permute.xlu0 %1066
          %1068 = vrot.lane.b32.xlu0 %v402, 16
          %v1069 = vpop.permute.xlu0 %1068
          %1070 = vrot.lane.b32.xlu0 %v403, 16
          %v1071 = vpop.permute.xlu0 %1070
          %1072 = vrot.lane.b32.xlu0 %v404, 16
          %v1073 = vpop.permute.xlu0 %1072
          %1074 = vrot.lane.b32.xlu0 %v405, 16
          %v1075 = vpop.permute.xlu0 %1074
          %1076 = vrot.lane.b32.xlu0 %v406, 16
          %v1077 = vpop.permute.xlu0 %1076
          %1078 = vrot.lane.b32.xlu0 %v407, 16
          %v1079 = vpop.permute.xlu0 %1078
          %1080 = vrot.lane.b32.xlu0 %v408, 16
          %v1081 = vpop.permute.xlu0 %1080
          %1082 = vrot.lane.b32.xlu0 %v409, 16
          %v1083 = vpop.permute.xlu0 %1082
          %1084 = vrot.lane.b32.xlu0 %v410, 16
          %v1085 = vpop.permute.xlu0 %1084
          %1086 = vrot.lane.b32.xlu0 %v411, 16
          %v1087 = vpop.permute.xlu0 %1086
          %1088 = vrot.lane.b32.xlu0 %v412, 16
          %v1089 = vpop.permute.xlu0 %1088
          %1090 = vrot.lane.b32.xlu0 %v413, 16
          %v1091 = vpop.permute.xlu0 %1090
          %1092 = vrot.lane.b32.xlu0 %v414, 16
          %v1093 = vpop.permute.xlu0 %1092
          %1094 = vrot.lane.b32.xlu0 %v415, 16
          %v1095 = vpop.permute.xlu0 %1094
          %1096 = vrot.lane.b32.xlu0 %v416, 16
          %v1097 = vpop.permute.xlu0 %1096
          %1098 = vrot.lane.b32.xlu0 %v417, 16
          %v1099 = vpop.permute.xlu0 %1098
          %1100 = vrot.lane.b32.xlu0 %v418, 16
          %v1101 = vpop.permute.xlu0 %1100
          %1102 = vrot.lane.b32.xlu0 %v419, 16
          %v1103 = vpop.permute.xlu0 %1102
          %1104 = vrot.lane.b32.xlu0 %v420, 16
          %v1105 = vpop.permute.xlu0 %1104
          %1106 = vrot.lane.b32.xlu0 %v421, 16
          %v1107 = vpop.permute.xlu0 %1106
          %1108 = vrot.lane.b32.xlu0 %v422, 16
          %v1109 = vpop.permute.xlu0 %1108
          %1110 = vrot.lane.b32.xlu0 %v423, 16
          %v1111 = vpop.permute.xlu0 %1110
          %1112 = vrot.lane.b32.xlu0 %v424, 16
          %v1113 = vpop.permute.xlu0 %1112
          %1114 = vrot.lane.b32.xlu0 %v425, 16
          %v1115 = vpop.permute.xlu0 %1114
          %1116 = vrot.lane.b32.xlu0 %v426, 16
          %v1117 = vpop.permute.xlu0 %1116
          %1118 = vrot.lane.b32.xlu0 %v427, 16
          %v1119 = vpop.permute.xlu0 %1118
          %1120 = vrot.lane.b32.xlu0 %v428, 16
          %v1121 = vpop.permute.xlu0 %1120
          %1122 = vrot.lane.b32.xlu0 %v429, 16
          %v1123 = vpop.permute.xlu0 %1122
          %1124 = vrot.lane.b32.xlu0 %v430, 16
          %v1125 = vpop.permute.xlu0 %1124
          %1126 = vrot.lane.b32.xlu0 %v431, 16
          %v1127 = vpop.permute.xlu0 %1126
          %1128 = vrot.lane.b32.xlu0 %v432, 16
          %v1129 = vpop.permute.xlu0 %1128
          %1130 = vrot.lane.b32.xlu0 %v433, 16
          %v1131 = vpop.permute.xlu0 %1130
          %1132 = vrot.lane.b32.xlu0 %v434, 16
          %v1133 = vpop.permute.xlu0 %1132
          %1134 = vrot.lane.b32.xlu0 %v435, 16
          %v1135 = vpop.permute.xlu0 %1134
          %1136 = vrot.lane.b32.xlu0 %v436, 16
          %v1137 = vpop.permute.xlu0 %1136
          %vm1186 = vcmask 162945
          %1187 = vst.msk [vmem:[#allocation3 - $0x1] sm:$0xfe] %vm1186, %v1043
          %vm1188 = vcmask 162944
          %1189 = vst.msk [vmem:[#allocation3 + $0x7] sm:$0xff] %vm1188, %v1045
          %vm1190 = vcmask 155776
          %1191 = vst.msk [vmem:[#allocation3 + $0xf] sm:$0x1] %vm1190, %v1047
          %1192 = vst.msk [vmem:[#allocation3 + $0xf] sm:$0xfe] %vm1186, %v1049
          %1193 = vst.msk [vmem:[#allocation3 + $0x17] sm:$0xff] %vm1188, %v1051
          %1194 = vst.msk [vmem:[#allocation3 + $0x1f] sm:$0x1] %vm1190, %v1053
          %1195 = vst.msk [vmem:[#allocation3 + $0x1f] sm:$0xfe] %vm1186, %v1055
          %1196 = vst.msk [vmem:[#allocation3 + $0x27] sm:$0xff] %vm1188, %v1057
          %1197 = vst.msk [vmem:[#allocation3 + $0x2f] sm:$0x1] %vm1190, %v1059
          %1198 = vst.msk [vmem:[#allocation3 + $0x2f] sm:$0xfe] %vm1186, %v1061
          %1199 = vst.msk [vmem:[#allocation3 + $0x37] sm:$0xff] %vm1188, %v1063
          %1200 = vst.msk [vmem:[#allocation3 + $0x3f] sm:$0x1] %vm1190, %v1065
          %1201 = vst.msk [vmem:[#allocation3 + $0x3f] sm:$0xfe] %vm1186, %v1067
          %1202 = vst.msk [vmem:[#allocation3 + $0x47] sm:$0xff] %vm1188, %v1069
          %1203 = vst.msk [vmem:[#allocation3 + $0x4f] sm:$0x1] %vm1190, %v1071
          %1204 = vst.msk [vmem:[#allocation3 + $0x4f] sm:$0xfe] %vm1186, %v1073
          %1205 = vst.msk [vmem:[#allocation3 + $0x57] sm:$0xff] %vm1188, %v1075
          %1206 = vst.msk [vmem:[#allocation3 + $0x5f] sm:$0x1] %vm1190, %v1077
          %1207 = vst.msk [vmem:[#allocation3 + $0x5f] sm:$0xfe] %vm1186, %v1079
          %1208 = vst.msk [vmem:[#allocation3 + $0x67] sm:$0xff] %vm1188, %v1081
          %1209 = vst.msk [vmem:[#allocation3 + $0x6f] sm:$0x1] %vm1190, %v1083
          %1210 = vst.msk [vmem:[#allocation3 + $0x6f] sm:$0xfe] %vm1186, %v1085
          %1211 = vst.msk [vmem:[#allocation3 + $0x77] sm:$0xff] %vm1188, %v1087
          %1212 = vst.msk [vmem:[#allocation3 + $0x7f] sm:$0x1] %vm1190, %v1089
          %1213 = vst.msk [vmem:[#allocation3 + $0x7f] sm:$0xfe] %vm1186, %v1091
          %1214 = vst.msk [vmem:[#allocation3 + $0x87] sm:$0xff] %vm1188, %v1093
          %1215 = vst.msk [vmem:[#allocation3 + $0x8f] sm:$0x1] %vm1190, %v1095
          %1216 = vst.msk [vmem:[#allocation3 + $0x8f] sm:$0xfe] %vm1186, %v1097
          %1217 = vst.msk [vmem:[#allocation3 + $0x97] sm:$0xff] %vm1188, %v1099
          %1218 = vst.msk [vmem:[#allocation3 + $0x9f] sm:$0x1] %vm1190, %v1101
          %1219 = vst.msk [vmem:[#allocation3 + $0x9f] sm:$0xfe] %vm1186, %v1103
          %1220 = vst.msk [vmem:[#allocation3 + $0xa7] sm:$0xff] %vm1188, %v1105
          %1221 = vst.msk [vmem:[#allocation3 + $0xaf] sm:$0x1] %vm1190, %v1107
          %1222 = vst.msk [vmem:[#allocation3 + $0xaf] sm:$0xfe] %vm1186, %v1109
          %1223 = vst.msk [vmem:[#allocation3 + $0xb7] sm:$0xff] %vm1188, %v1111
          %1224 = vst.msk [vmem:[#allocation3 + $0xbf] sm:$0x1] %vm1190, %v1113
          %1225 = vst.msk [vmem:[#allocation3 + $0xbf] sm:$0xfe] %vm1186, %v1115
          %1226 = vst.msk [vmem:[#allocation3 + $0xc7] sm:$0xff] %vm1188, %v1117
          %1227 = vst.msk [vmem:[#allocation3 + $0xcf] sm:$0x1] %vm1190, %v1119
          %1228 = vst.msk [vmem:[#allocation3 + $0xcf] sm:$0xfe] %vm1186, %v1121
          %1229 = vst.msk [vmem:[#allocation3 + $0xd7] sm:$0xff] %vm1188, %v1123
          %1230 = vst.msk [vmem:[#allocation3 + $0xdf] sm:$0x1] %vm1190, %v1125
          %1231 = vst.msk [vmem:[#allocation3 + $0xdf] sm:$0xfe] %vm1186, %v1127
          %1232 = vst.msk [vmem:[#allocation3 + $0xe7] sm:$0xff] %vm1188, %v1129
          %1233 = vst.msk [vmem:[#allocation3 + $0xef] sm:$0x1] %vm1190, %v1131
          %1234 = vst.msk [vmem:[#allocation3 + $0xef] sm:$0xfe] %vm1186, %v1133
          %1235 = vst.msk [vmem:[#allocation3 + $0xf7] sm:$0xff] %vm1188, %v1135
          %1236 = vst.msk [vmem:[#allocation3 + $0xff] sm:$0x1] %vm1190, %v1137
          %1237 = vrot.lane.b32.xlu0 %v389, 20
          %v1238 = vpop.permute.xlu0 %1237
          %1239 = vrot.lane.b32.xlu0 %v390, 20
          %v1240 = vpop.permute.xlu0 %1239
          %1241 = vrot.lane.b32.xlu0 %v391, 20
          %v1242 = vpop.permute.xlu0 %1241
          %1243 = vrot.lane.b32.xlu0 %v392, 20
          %v1244 = vpop.permute.xlu0 %1243
          %1245 = vrot.lane.b32.xlu0 %v393, 20
          %v1246 = vpop.permute.xlu0 %1245
          %1247 = vrot.lane.b32.xlu0 %v394, 20
          %v1248 = vpop.permute.xlu0 %1247
          %1249 = vrot.lane.b32.xlu0 %v395, 20
          %v1250 = vpop.permute.xlu0 %1249
          %1251 = vrot.lane.b32.xlu0 %v396, 20
          %v1252 = vpop.permute.xlu0 %1251
          %1253 = vrot.lane.b32.xlu0 %v397, 20
          %v1254 = vpop.permute.xlu0 %1253
          %1255 = vrot.lane.b32.xlu0 %v398, 20
          %v1256 = vpop.permute.xlu0 %1255
          %1257 = vrot.lane.b32.xlu0 %v399, 20
          %v1258 = vpop.permute.xlu0 %1257
          %1259 = vrot.lane.b32.xlu0 %v400, 20
          %v1260 = vpop.permute.xlu0 %1259
          %1261 = vrot.lane.b32.xlu0 %v401, 20
          %v1262 = vpop.permute.xlu0 %1261
          %1263 = vrot.lane.b32.xlu0 %v402, 20
          %v1264 = vpop.permute.xlu0 %1263
          %1265 = vrot.lane.b32.xlu0 %v403, 20
          %v1266 = vpop.permute.xlu0 %1265
          %1267 = vrot.lane.b32.xlu0 %v404, 20
          %v1268 = vpop.permute.xlu0 %1267
          %1269 = vrot.lane.b32.xlu0 %v405, 20
          %v1270 = vpop.permute.xlu0 %1269
          %1271 = vrot.lane.b32.xlu0 %v406, 20
          %v1272 = vpop.permute.xlu0 %1271
          %1273 = vrot.lane.b32.xlu0 %v407, 20
          %v1274 = vpop.permute.xlu0 %1273
          %1275 = vrot.lane.b32.xlu0 %v408, 20
          %v1276 = vpop.permute.xlu0 %1275
          %1277 = vrot.lane.b32.xlu0 %v409, 20
          %v1278 = vpop.permute.xlu0 %1277
          %1279 = vrot.lane.b32.xlu0 %v410, 20
          %v1280 = vpop.permute.xlu0 %1279
          %1281 = vrot.lane.b32.xlu0 %v411, 20
          %v1282 = vpop.permute.xlu0 %1281
          %1283 = vrot.lane.b32.xlu0 %v412, 20
          %v1284 = vpop.permute.xlu0 %1283
          %1285 = vrot.lane.b32.xlu0 %v413, 20
          %v1286 = vpop.permute.xlu0 %1285
          %1287 = vrot.lane.b32.xlu0 %v414, 20
          %v1288 = vpop.permute.xlu0 %1287
          %1289 = vrot.lane.b32.xlu0 %v415, 20
          %v1290 = vpop.permute.xlu0 %1289
          %1291 = vrot.lane.b32.xlu0 %v416, 20
          %v1292 = vpop.permute.xlu0 %1291
          %1293 = vrot.lane.b32.xlu0 %v417, 20
          %v1294 = vpop.permute.xlu0 %1293
          %1295 = vrot.lane.b32.xlu0 %v418, 20
          %v1296 = vpop.permute.xlu0 %1295
          %1297 = vrot.lane.b32.xlu0 %v419, 20
          %v1298 = vpop.permute.xlu0 %1297
          %1299 = vrot.lane.b32.xlu0 %v420, 20
          %v1300 = vpop.permute.xlu0 %1299
          %1301 = vrot.lane.b32.xlu0 %v421, 20
          %v1302 = vpop.permute.xlu0 %1301
          %1303 = vrot.lane.b32.xlu0 %v422, 20
          %v1304 = vpop.permute.xlu0 %1303
          %1305 = vrot.lane.b32.xlu0 %v423, 20
          %v1306 = vpop.permute.xlu0 %1305
          %1307 = vrot.lane.b32.xlu0 %v424, 20
          %v1308 = vpop.permute.xlu0 %1307
          %1309 = vrot.lane.b32.xlu0 %v425, 20
          %v1310 = vpop.permute.xlu0 %1309
          %1311 = vrot.lane.b32.xlu0 %v426, 20
          %v1312 = vpop.permute.xlu0 %1311
          %1313 = vrot.lane.b32.xlu0 %v427, 20
          %v1314 = vpop.permute.xlu0 %1313
          %1315 = vrot.lane.b32.xlu0 %v428, 20
          %v1316 = vpop.permute.xlu0 %1315
          %1317 = vrot.lane.b32.xlu0 %v429, 20
          %v1318 = vpop.permute.xlu0 %1317
          %1319 = vrot.lane.b32.xlu0 %v430, 20
          %v1320 = vpop.permute.xlu0 %1319
          %1321 = vrot.lane.b32.xlu0 %v431, 20
          %v1322 = vpop.permute.xlu0 %1321
          %1323 = vrot.lane.b32.xlu0 %v432, 20
          %v1324 = vpop.permute.xlu0 %1323
          %1325 = vrot.lane.b32.xlu0 %v433, 20
          %v1326 = vpop.permute.xlu0 %1325
          %1327 = vrot.lane.b32.xlu0 %v434, 20
          %v1328 = vpop.permute.xlu0 %1327
          %1329 = vrot.lane.b32.xlu0 %v435, 20
          %v1330 = vpop.permute.xlu0 %1329
          %1331 = vrot.lane.b32.xlu0 %v436, 20
          %v1332 = vpop.permute.xlu0 %1331
          %vm1381 = vcmask 195746
          %1382 = vst.msk [vmem:[#allocation3 - $0x2] sm:$0xfc] %vm1381, %v1238
          %vm1383 = vcmask 195744
          %1384 = vst.msk [vmem:[#allocation3 + $0x6] sm:$0xff] %vm1383, %v1240
          %vm1385 = vcmask 189600
          %1386 = vst.msk [vmem:[#allocation3 + $0xe] sm:$0x3] %vm1385, %v1242
          %1387 = vst.msk [vmem:[#allocation3 + $0xe] sm:$0xfc] %vm1381, %v1244
          %1388 = vst.msk [vmem:[#allocation3 + $0x16] sm:$0xff] %vm1383, %v1246
          %1389 = vst.msk [vmem:[#allocation3 + $0x1e] sm:$0x3] %vm1385, %v1248
          %1390 = vst.msk [vmem:[#allocation3 + $0x1e] sm:$0xfc] %vm1381, %v1250
          %1391 = vst.msk [vmem:[#allocation3 + $0x26] sm:$0xff] %vm1383, %v1252
          %1392 = vst.msk [vmem:[#allocation3 + $0x2e] sm:$0x3] %vm1385, %v1254
          %1393 = vst.msk [vmem:[#allocation3 + $0x2e] sm:$0xfc] %vm1381, %v1256
          %1394 = vst.msk [vmem:[#allocation3 + $0x36] sm:$0xff] %vm1383, %v1258
          %1395 = vst.msk [vmem:[#allocation3 + $0x3e] sm:$0x3] %vm1385, %v1260
          %1396 = vst.msk [vmem:[#allocation3 + $0x3e] sm:$0xfc] %vm1381, %v1262
          %1397 = vst.msk [vmem:[#allocation3 + $0x46] sm:$0xff] %vm1383, %v1264
          %1398 = vst.msk [vmem:[#allocation3 + $0x4e] sm:$0x3] %vm1385, %v1266
          %1399 = vst.msk [vmem:[#allocation3 + $0x4e] sm:$0xfc] %vm1381, %v1268
          %1400 = vst.msk [vmem:[#allocation3 + $0x56] sm:$0xff] %vm1383, %v1270
          %1401 = vst.msk [vmem:[#allocation3 + $0x5e] sm:$0x3] %vm1385, %v1272
          %1402 = vst.msk [vmem:[#allocation3 + $0x5e] sm:$0xfc] %vm1381, %v1274
          %1403 = vst.msk [vmem:[#allocation3 + $0x66] sm:$0xff] %vm1383, %v1276
          %1404 = vst.msk [vmem:[#allocation3 + $0x6e] sm:$0x3] %vm1385, %v1278
          %1405 = vst.msk [vmem:[#allocation3 + $0x6e] sm:$0xfc] %vm1381, %v1280
          %1406 = vst.msk [vmem:[#allocation3 + $0x76] sm:$0xff] %vm1383, %v1282
          %1407 = vst.msk [vmem:[#allocation3 + $0x7e] sm:$0x3] %vm1385, %v1284
          %1408 = vst.msk [vmem:[#allocation3 + $0x7e] sm:$0xfc] %vm1381, %v1286
          %1409 = vst.msk [vmem:[#allocation3 + $0x86] sm:$0xff] %vm1383, %v1288
          %1410 = vst.msk [vmem:[#allocation3 + $0x8e] sm:$0x3] %vm1385, %v1290
          %1411 = vst.msk [vmem:[#allocation3 + $0x8e] sm:$0xfc] %vm1381, %v1292
          %1412 = vst.msk [vmem:[#allocation3 + $0x96] sm:$0xff] %vm1383, %v1294
          %1413 = vst.msk [vmem:[#allocation3 + $0x9e] sm:$0x3] %vm1385, %v1296
          %1414 = vst.msk [vmem:[#allocation3 + $0x9e] sm:$0xfc] %vm1381, %v1298
          %1415 = vst.msk [vmem:[#allocation3 + $0xa6] sm:$0xff] %vm1383, %v1300
          %1416 = vst.msk [vmem:[#allocation3 + $0xae] sm:$0x3] %vm1385, %v1302
          %1417 = vst.msk [vmem:[#allocation3 + $0xae] sm:$0xfc] %vm1381, %v1304
          %1418 = vst.msk [vmem:[#allocation3 + $0xb6] sm:$0xff] %vm1383, %v1306
          %1419 = vst.msk [vmem:[#allocation3 + $0xbe] sm:$0x3] %vm1385, %v1308
          %1420 = vst.msk [vmem:[#allocation3 + $0xbe] sm:$0xfc] %vm1381, %v1310
          %1421 = vst.msk [vmem:[#allocation3 + $0xc6] sm:$0xff] %vm1383, %v1312
          %1422 = vst.msk [vmem:[#allocation3 + $0xce] sm:$0x3] %vm1385, %v1314
          %1423 = vst.msk [vmem:[#allocation3 + $0xce] sm:$0xfc] %vm1381, %v1316
          %1424 = vst.msk [vmem:[#allocation3 + $0xd6] sm:$0xff] %vm1383, %v1318
          %1425 = vst.msk [vmem:[#allocation3 + $0xde] sm:$0x3] %vm1385, %v1320
          %1426 = vst.msk [vmem:[#allocation3 + $0xde] sm:$0xfc] %vm1381, %v1322
          %1427 = vst.msk [vmem:[#allocation3 + $0xe6] sm:$0xff] %vm1383, %v1324
          %1428 = vst.msk [vmem:[#allocation3 + $0xee] sm:$0x3] %vm1385, %v1326
          %1429 = vst.msk [vmem:[#allocation3 + $0xee] sm:$0xfc] %vm1381, %v1328
          %1430 = vst.msk [vmem:[#allocation3 + $0xf6] sm:$0xff] %vm1383, %v1330
          %1431 = vst.msk [vmem:[#allocation3 + $0xfe] sm:$0x3] %vm1385, %v1332
          %1434 = vrot.lane.b32.xlu0 %v392, 24
          %v1435 = vpop.permute.xlu0 %1434
          %1436 = vrot.lane.b32.xlu0 %v393, 24
          %v1437 = vpop.permute.xlu0 %1436
          %1438 = vrot.lane.b32.xlu0 %v395, 24
          %v1439 = vpop.permute.xlu0 %1438
          %1440 = vrot.lane.b32.xlu0 %v396, 24
          %v1441 = vpop.permute.xlu0 %1440
          %1442 = vrot.lane.b32.xlu0 %v398, 24
          %v1443 = vpop.permute.xlu0 %1442
          %1444 = vrot.lane.b32.xlu0 %v399, 24
          %v1445 = vpop.permute.xlu0 %1444
          %1446 = vrot.lane.b32.xlu0 %v401, 24
          %v1447 = vpop.permute.xlu0 %1446
          %1448 = vrot.lane.b32.xlu0 %v402, 24
          %v1449 = vpop.permute.xlu0 %1448
          %1450 = vrot.lane.b32.xlu0 %v404, 24
          %v1451 = vpop.permute.xlu0 %1450
          %1452 = vrot.lane.b32.xlu0 %v405, 24
          %v1453 = vpop.permute.xlu0 %1452
          %1454 = vrot.lane.b32.xlu0 %v407, 24
          %v1455 = vpop.permute.xlu0 %1454
          %1456 = vrot.lane.b32.xlu0 %v408, 24
          %v1457 = vpop.permute.xlu0 %1456
          %1458 = vrot.lane.b32.xlu0 %v410, 24
          %v1459 = vpop.permute.xlu0 %1458
          %1460 = vrot.lane.b32.xlu0 %v411, 24
          %v1461 = vpop.permute.xlu0 %1460
          %1462 = vrot.lane.b32.xlu0 %v413, 24
          %v1463 = vpop.permute.xlu0 %1462
          %1464 = vrot.lane.b32.xlu0 %v414, 24
          %v1465 = vpop.permute.xlu0 %1464
          %1466 = vrot.lane.b32.xlu0 %v416, 24
          %v1467 = vpop.permute.xlu0 %1466
          %1468 = vrot.lane.b32.xlu0 %v417, 24
          %v1469 = vpop.permute.xlu0 %1468
          %1470 = vrot.lane.b32.xlu0 %v419, 24
          %v1471 = vpop.permute.xlu0 %1470
          %1472 = vrot.lane.b32.xlu0 %v420, 24
          %v1473 = vpop.permute.xlu0 %1472
          %1474 = vrot.lane.b32.xlu0 %v422, 24
          %v1475 = vpop.permute.xlu0 %1474
          %1476 = vrot.lane.b32.xlu0 %v423, 24
          %v1477 = vpop.permute.xlu0 %1476
          %1478 = vrot.lane.b32.xlu0 %v425, 24
          %v1479 = vpop.permute.xlu0 %1478
          %1480 = vrot.lane.b32.xlu0 %v426, 24
          %v1481 = vpop.permute.xlu0 %1480
          %1482 = vrot.lane.b32.xlu0 %v428, 24
          %v1483 = vpop.permute.xlu0 %1482
          %1484 = vrot.lane.b32.xlu0 %v429, 24
          %v1485 = vpop.permute.xlu0 %1484
          %1486 = vrot.lane.b32.xlu0 %v431, 24
          %v1487 = vpop.permute.xlu0 %1486
          %1488 = vrot.lane.b32.xlu0 %v432, 24
          %v1489 = vpop.permute.xlu0 %1488
          %1490 = vrot.lane.b32.xlu0 %v434, 24
          %v1491 = vpop.permute.xlu0 %1490
          %1492 = vrot.lane.b32.xlu0 %v435, 24
          %v1493 = vpop.permute.xlu0 %1492
          %1494 = vrot.lane.b32.xlu0 %v437, 24
          %v1495 = vpop.permute.xlu0 %1494
          %1496 = vrot.lane.b32.xlu0 %v438, 24
          %v1497 = vpop.permute.xlu0 %1496
          %vm1530 = vcmask 228544
          %1531 = vst.msk [vmem:[#allocation3] sm:$0xff] %vm1530, %v1435
          %1532 = vst.msk [vmem:[#allocation3 + $0x8] sm:$0xff] %vm1530, %v1437
          %1533 = vst.msk [vmem:[#allocation3 + $0x10] sm:$0xff] %vm1530, %v1439
          %1534 = vst.msk [vmem:[#allocation3 + $0x18] sm:$0xff] %vm1530, %v1441
          %1535 = vst.msk [vmem:[#allocation3 + $0x20] sm:$0xff] %vm1530, %v1443
          %1536 = vst.msk [vmem:[#allocation3 + $0x28] sm:$0xff] %vm1530, %v1445
          %1537 = vst.msk [vmem:[#allocation3 + $0x30] sm:$0xff] %vm1530, %v1447
          %1538 = vst.msk [vmem:[#allocation3 + $0x38] sm:$0xff] %vm1530, %v1449
          %1539 = vst.msk [vmem:[#allocation3 + $0x40] sm:$0xff] %vm1530, %v1451
          %1540 = vst.msk [vmem:[#allocation3 + $0x48] sm:$0xff] %vm1530, %v1453
          %1541 = vst.msk [vmem:[#allocation3 + $0x50] sm:$0xff] %vm1530, %v1455
          %1542 = vst.msk [vmem:[#allocation3 + $0x58] sm:$0xff] %vm1530, %v1457
          %1543 = vst.msk [vmem:[#allocation3 + $0x60] sm:$0xff] %vm1530, %v1459
          %1544 = vst.msk [vmem:[#allocation3 + $0x68] sm:$0xff] %vm1530, %v1461
          %1545 = vst.msk [vmem:[#allocation3 + $0x70] sm:$0xff] %vm1530, %v1463
          %1546 = vst.msk [vmem:[#allocation3 + $0x78] sm:$0xff] %vm1530, %v1465
          %1547 = vst.msk [vmem:[#allocation3 + $0x80] sm:$0xff] %vm1530, %v1467
          %1548 = vst.msk [vmem:[#allocation3 + $0x88] sm:$0xff] %vm1530, %v1469
          %1549 = vst.msk [vmem:[#allocation3 + $0x90] sm:$0xff] %vm1530, %v1471
          %1550 = vst.msk [vmem:[#allocation3 + $0x98] sm:$0xff] %vm1530, %v1473
          %1551 = vst.msk [vmem:[#allocation3 + $0xa0] sm:$0xff] %vm1530, %v1475
          %1552 = vst.msk [vmem:[#allocation3 + $0xa8] sm:$0xff] %vm1530, %v1477
          %1553 = vst.msk [vmem:[#allocation3 + $0xb0] sm:$0xff] %vm1530, %v1479
          %1554 = vst.msk [vmem:[#allocation3 + $0xb8] sm:$0xff] %vm1530, %v1481
          %1555 = vst.msk [vmem:[#allocation3 + $0xc0] sm:$0xff] %vm1530, %v1483
          %1556 = vst.msk [vmem:[#allocation3 + $0xc8] sm:$0xff] %vm1530, %v1485
          %1557 = vst.msk [vmem:[#allocation3 + $0xd0] sm:$0xff] %vm1530, %v1487
          %1558 = vst.msk [vmem:[#allocation3 + $0xd8] sm:$0xff] %vm1530, %v1489
          %1559 = vst.msk [vmem:[#allocation3 + $0xe0] sm:$0xff] %vm1530, %v1491
          %1560 = vst.msk [vmem:[#allocation3 + $0xe8] sm:$0xff] %vm1530, %v1493
          %1561 = vst.msk [vmem:[#allocation3 + $0xf0] sm:$0xff] %vm1530, %v1495
          %1562 = vst.msk [vmem:[#allocation3 + $0xf8] sm:$0xff] %vm1530, %v1497
          %1564 = vrot.lane.b32.xlu0 %v392, 28
          %v1565 = vpop.permute.xlu0 %1564
          %1566 = vrot.lane.b32.xlu0 %v393, 28
          %v1567 = vpop.permute.xlu0 %1566
          %1568 = vrot.lane.b32.xlu0 %v394, 28
          %v1569 = vpop.permute.xlu0 %1568
          %1570 = vrot.lane.b32.xlu0 %v395, 28
          %v1571 = vpop.permute.xlu0 %1570
          %1572 = vrot.lane.b32.xlu0 %v396, 28
          %v1573 = vpop.permute.xlu0 %1572
          %1574 = vrot.lane.b32.xlu0 %v397, 28
          %v1575 = vpop.permute.xlu0 %1574
          %1576 = vrot.lane.b32.xlu0 %v398, 28
          %v1577 = vpop.permute.xlu0 %1576
          %1578 = vrot.lane.b32.xlu0 %v399, 28
          %v1579 = vpop.permute.xlu0 %1578
          %1580 = vrot.lane.b32.xlu0 %v400, 28
          %v1581 = vpop.permute.xlu0 %1580
          %1582 = vrot.lane.b32.xlu0 %v401, 28
          %v1583 = vpop.permute.xlu0 %1582
          %1584 = vrot.lane.b32.xlu0 %v402, 28
          %v1585 = vpop.permute.xlu0 %1584
          %1586 = vrot.lane.b32.xlu0 %v403, 28
          %v1587 = vpop.permute.xlu0 %1586
          %1588 = vrot.lane.b32.xlu0 %v404, 28
          %v1589 = vpop.permute.xlu0 %1588
          %1590 = vrot.lane.b32.xlu0 %v405, 28
          %v1591 = vpop.permute.xlu0 %1590
          %1592 = vrot.lane.b32.xlu0 %v406, 28
          %v1593 = vpop.permute.xlu0 %1592
          %1594 = vrot.lane.b32.xlu0 %v407, 28
          %v1595 = vpop.permute.xlu0 %1594
          %1596 = vrot.lane.b32.xlu0 %v408, 28
          %v1597 = vpop.permute.xlu0 %1596
          %1598 = vrot.lane.b32.xlu0 %v409, 28
          %v1599 = vpop.permute.xlu0 %1598
          %1600 = vrot.lane.b32.xlu0 %v410, 28
          %v1601 = vpop.permute.xlu0 %1600
          %1602 = vrot.lane.b32.xlu0 %v411, 28
          %v1603 = vpop.permute.xlu0 %1602
          %1604 = vrot.lane.b32.xlu0 %v412, 28
          %v1605 = vpop.permute.xlu0 %1604
          %1606 = vrot.lane.b32.xlu0 %v413, 28
          %v1607 = vpop.permute.xlu0 %1606
          %1608 = vrot.lane.b32.xlu0 %v414, 28
          %v1609 = vpop.permute.xlu0 %1608
          %1610 = vrot.lane.b32.xlu0 %v415, 28
          %v1611 = vpop.permute.xlu0 %1610
          %1612 = vrot.lane.b32.xlu0 %v416, 28
          %v1613 = vpop.permute.xlu0 %1612
          %1614 = vrot.lane.b32.xlu0 %v417, 28
          %v1615 = vpop.permute.xlu0 %1614
          %1616 = vrot.lane.b32.xlu0 %v418, 28
          %v1617 = vpop.permute.xlu0 %1616
          %1618 = vrot.lane.b32.xlu0 %v419, 28
          %v1619 = vpop.permute.xlu0 %1618
          %1620 = vrot.lane.b32.xlu0 %v420, 28
          %v1621 = vpop.permute.xlu0 %1620
          %1622 = vrot.lane.b32.xlu0 %v421, 28
          %v1623 = vpop.permute.xlu0 %1622
          %1624 = vrot.lane.b32.xlu0 %v422, 28
          %v1625 = vpop.permute.xlu0 %1624
          %1626 = vrot.lane.b32.xlu0 %v423, 28
          %v1627 = vpop.permute.xlu0 %1626
          %1628 = vrot.lane.b32.xlu0 %v424, 28
          %v1629 = vpop.permute.xlu0 %1628
          %1630 = vrot.lane.b32.xlu0 %v425, 28
          %v1631 = vpop.permute.xlu0 %1630
          %1632 = vrot.lane.b32.xlu0 %v426, 28
          %v1633 = vpop.permute.xlu0 %1632
          %1634 = vrot.lane.b32.xlu0 %v427, 28
          %v1635 = vpop.permute.xlu0 %1634
          %1636 = vrot.lane.b32.xlu0 %v428, 28
          %v1637 = vpop.permute.xlu0 %1636
          %1638 = vrot.lane.b32.xlu0 %v429, 28
          %v1639 = vpop.permute.xlu0 %1638
          %1640 = vrot.lane.b32.xlu0 %v430, 28
          %v1641 = vpop.permute.xlu0 %1640
          %1642 = vrot.lane.b32.xlu0 %v431, 28
          %v1643 = vpop.permute.xlu0 %1642
          %1644 = vrot.lane.b32.xlu0 %v432, 28
          %v1645 = vpop.permute.xlu0 %1644
          %1646 = vrot.lane.b32.xlu0 %v433, 28
          %v1647 = vpop.permute.xlu0 %1646
          %1648 = vrot.lane.b32.xlu0 %v434, 28
          %v1649 = vpop.permute.xlu0 %1648
          %1650 = vrot.lane.b32.xlu0 %v435, 28
          %v1651 = vpop.permute.xlu0 %1650
          %1652 = vrot.lane.b32.xlu0 %v436, 28
          %v1653 = vpop.permute.xlu0 %1652
          %1654 = vrot.lane.b32.xlu0 %v437, 28
          %v1655 = vpop.permute.xlu0 %1654
          %1656 = vrot.lane.b32.xlu0 %v438, 28
          %v1657 = vpop.permute.xlu0 %1656
          %1658 = vrot.lane.b32.xlu0 %v439, 28
          %v1659 = vpop.permute.xlu0 %1658
          %vm1708 = vcmask 261345
          %1709 = vst.msk [vmem:[#allocation3 - $0x1] sm:$0xfe] %vm1708, %v1565
          %vm1710 = vcmask 261344
          %1711 = vst.msk [vmem:[#allocation3 + $0x7] sm:$0xff] %vm1710, %v1567
          %vm1712 = vcmask 254176
          %1713 = vst.msk [vmem:[#allocation3 + $0xf] sm:$0x1] %vm1712, %v1569
          %1714 = vst.msk [vmem:[#allocation3 + $0xf] sm:$0xfe] %vm1708, %v1571
          %1715 = vst.msk [vmem:[#allocation3 + $0x17] sm:$0xff] %vm1710, %v1573
          %1716 = vst.msk [vmem:[#allocation3 + $0x1f] sm:$0x1] %vm1712, %v1575
          %1717 = vst.msk [vmem:[#allocation3 + $0x1f] sm:$0xfe] %vm1708, %v1577
          %1718 = vst.msk [vmem:[#allocation3 + $0x27] sm:$0xff] %vm1710, %v1579
          %1719 = vst.msk [vmem:[#allocation3 + $0x2f] sm:$0x1] %vm1712, %v1581
          %1720 = vst.msk [vmem:[#allocation3 + $0x2f] sm:$0xfe] %vm1708, %v1583
          %1721 = vst.msk [vmem:[#allocation3 + $0x37] sm:$0xff] %vm1710, %v1585
          %1722 = vst.msk [vmem:[#allocation3 + $0x3f] sm:$0x1] %vm1712, %v1587
          %1723 = vst.msk [vmem:[#allocation3 + $0x3f] sm:$0xfe] %vm1708, %v1589
          %1724 = vst.msk [vmem:[#allocation3 + $0x47] sm:$0xff] %vm1710, %v1591
          %1725 = vst.msk [vmem:[#allocation3 + $0x4f] sm:$0x1] %vm1712, %v1593
          %1726 = vst.msk [vmem:[#allocation3 + $0x4f] sm:$0xfe] %vm1708, %v1595
          %1727 = vst.msk [vmem:[#allocation3 + $0x57] sm:$0xff] %vm1710, %v1597
          %1728 = vst.msk [vmem:[#allocation3 + $0x5f] sm:$0x1] %vm1712, %v1599
          %1729 = vst.msk [vmem:[#allocation3 + $0x5f] sm:$0xfe] %vm1708, %v1601
          %1730 = vst.msk [vmem:[#allocation3 + $0x67] sm:$0xff] %vm1710, %v1603
          %1731 = vst.msk [vmem:[#allocation3 + $0x6f] sm:$0x1] %vm1712, %v1605
          %1732 = vst.msk [vmem:[#allocation3 + $0x6f] sm:$0xfe] %vm1708, %v1607
          %1733 = vst.msk [vmem:[#allocation3 + $0x77] sm:$0xff] %vm1710, %v1609
          %1734 = vst.msk [vmem:[#allocation3 + $0x7f] sm:$0x1] %vm1712, %v1611
          %1735 = vst.msk [vmem:[#allocation3 + $0x7f] sm:$0xfe] %vm1708, %v1613
          %1736 = vst.msk [vmem:[#allocation3 + $0x87] sm:$0xff] %vm1710, %v1615
          %1737 = vst.msk [vmem:[#allocation3 + $0x8f] sm:$0x1] %vm1712, %v1617
          %1738 = vst.msk [vmem:[#allocation3 + $0x8f] sm:$0xfe] %vm1708, %v1619
          %1739 = vst.msk [vmem:[#allocation3 + $0x97] sm:$0xff] %vm1710, %v1621
          %1740 = vst.msk [vmem:[#allocation3 + $0x9f] sm:$0x1] %vm1712, %v1623
          %1741 = vst.msk [vmem:[#allocation3 + $0x9f] sm:$0xfe] %vm1708, %v1625
          %1742 = vst.msk [vmem:[#allocation3 + $0xa7] sm:$0xff] %vm1710, %v1627
          %1743 = vst.msk [vmem:[#allocation3 + $0xaf] sm:$0x1] %vm1712, %v1629
          %1744 = vst.msk [vmem:[#allocation3 + $0xaf] sm:$0xfe] %vm1708, %v1631
          %1745 = vst.msk [vmem:[#allocation3 + $0xb7] sm:$0xff] %vm1710, %v1633
          %1746 = vst.msk [vmem:[#allocation3 + $0xbf] sm:$0x1] %vm1712, %v1635
          %1747 = vst.msk [vmem:[#allocation3 + $0xbf] sm:$0xfe] %vm1708, %v1637
          %1748 = vst.msk [vmem:[#allocation3 + $0xc7] sm:$0xff] %vm1710, %v1639
          %1749 = vst.msk [vmem:[#allocation3 + $0xcf] sm:$0x1] %vm1712, %v1641
          %1750 = vst.msk [vmem:[#allocation3 + $0xcf] sm:$0xfe] %vm1708, %v1643
          %1751 = vst.msk [vmem:[#allocation3 + $0xd7] sm:$0xff] %vm1710, %v1645
          %1752 = vst.msk [vmem:[#allocation3 + $0xdf] sm:$0x1] %vm1712, %v1647
          %1753 = vst.msk [vmem:[#allocation3 + $0xdf] sm:$0xfe] %vm1708, %v1649
          %1754 = vst.msk [vmem:[#allocation3 + $0xe7] sm:$0xff] %vm1710, %v1651
          %1755 = vst.msk [vmem:[#allocation3 + $0xef] sm:$0x1] %vm1712, %v1653
          %1756 = vst.msk [vmem:[#allocation3 + $0xef] sm:$0xfe] %vm1708, %v1655
          %1757 = vst.msk [vmem:[#allocation3 + $0xf7] sm:$0xff] %vm1710, %v1657
          %1758 = vst.msk [vmem:[#allocation3 + $0xff] sm:$0x1] %vm1712, %v1659
          %1759 = vrot.lane.b32.xlu0 %v392, 32
          %v1760 = vpop.permute.xlu0 %1759
          %1761 = vrot.lane.b32.xlu0 %v393, 32
          %v1762 = vpop.permute.xlu0 %1761
          %1763 = vrot.lane.b32.xlu0 %v394, 32
          %v1764 = vpop.permute.xlu0 %1763
          %1765 = vrot.lane.b32.xlu0 %v395, 32
          %v1766 = vpop.permute.xlu0 %1765
          %1767 = vrot.lane.b32.xlu0 %v396, 32
          %v1768 = vpop.permute.xlu0 %1767
          %1769 = vrot.lane.b32.xlu0 %v397, 32
          %v1770 = vpop.permute.xlu0 %1769
          %1771 = vrot.lane.b32.xlu0 %v398, 32
          %v1772 = vpop.permute.xlu0 %1771
          %1773 = vrot.lane.b32.xlu0 %v399, 32
          %v1774 = vpop.permute.xlu0 %1773
          %1775 = vrot.lane.b32.xlu0 %v400, 32
          %v1776 = vpop.permute.xlu0 %1775
          %1777 = vrot.lane.b32.xlu0 %v401, 32
          %v1778 = vpop.permute.xlu0 %1777
          %1779 = vrot.lane.b32.xlu0 %v402, 32
          %v1780 = vpop.permute.xlu0 %1779
          %1781 = vrot.lane.b32.xlu0 %v403, 32
          %v1782 = vpop.permute.xlu0 %1781
          %1783 = vrot.lane.b32.xlu0 %v404, 32
          %v1784 = vpop.permute.xlu0 %1783
          %1785 = vrot.lane.b32.xlu0 %v405, 32
          %v1786 = vpop.permute.xlu0 %1785
          %1787 = vrot.lane.b32.xlu0 %v406, 32
          %v1788 = vpop.permute.xlu0 %1787
          %1789 = vrot.lane.b32.xlu0 %v407, 32
          %v1790 = vpop.permute.xlu0 %1789
          %1791 = vrot.lane.b32.xlu0 %v408, 32
          %v1792 = vpop.permute.xlu0 %1791
          %1793 = vrot.lane.b32.xlu0 %v409, 32
          %v1794 = vpop.permute.xlu0 %1793
          %1795 = vrot.lane.b32.xlu0 %v410, 32
          %v1796 = vpop.permute.xlu0 %1795
          %1797 = vrot.lane.b32.xlu0 %v411, 32
          %v1798 = vpop.permute.xlu0 %1797
          %1799 = vrot.lane.b32.xlu0 %v412, 32
          %v1800 = vpop.permute.xlu0 %1799
          %1801 = vrot.lane.b32.xlu0 %v413, 32
          %v1802 = vpop.permute.xlu0 %1801
          %1803 = vrot.lane.b32.xlu0 %v414, 32
          %v1804 = vpop.permute.xlu0 %1803
          %1805 = vrot.lane.b32.xlu0 %v415, 32
          %v1806 = vpop.permute.xlu0 %1805
          %1807 = vrot.lane.b32.xlu0 %v416, 32
          %v1808 = vpop.permute.xlu0 %1807
          %1809 = vrot.lane.b32.xlu0 %v417, 32
          %v1810 = vpop.permute.xlu0 %1809
          %1811 = vrot.lane.b32.xlu0 %v418, 32
          %v1812 = vpop.permute.xlu0 %1811
          %1813 = vrot.lane.b32.xlu0 %v419, 32
          %v1814 = vpop.permute.xlu0 %1813
          %1815 = vrot.lane.b32.xlu0 %v420, 32
          %v1816 = vpop.permute.xlu0 %1815
          %1817 = vrot.lane.b32.xlu0 %v421, 32
          %v1818 = vpop.permute.xlu0 %1817
          %1819 = vrot.lane.b32.xlu0 %v422, 32
          %v1820 = vpop.permute.xlu0 %1819
          %1821 = vrot.lane.b32.xlu0 %v423, 32
          %v1822 = vpop.permute.xlu0 %1821
          %1823 = vrot.lane.b32.xlu0 %v424, 32
          %v1824 = vpop.permute.xlu0 %1823
          %1825 = vrot.lane.b32.xlu0 %v425, 32
          %v1826 = vpop.permute.xlu0 %1825
          %1827 = vrot.lane.b32.xlu0 %v426, 32
          %v1828 = vpop.permute.xlu0 %1827
          %1829 = vrot.lane.b32.xlu0 %v427, 32
          %v1830 = vpop.permute.xlu0 %1829
          %1831 = vrot.lane.b32.xlu0 %v428, 32
          %v1832 = vpop.permute.xlu0 %1831
          %1833 = vrot.lane.b32.xlu0 %v429, 32
          %v1834 = vpop.permute.xlu0 %1833
          %1835 = vrot.lane.b32.xlu0 %v430, 32
          %v1836 = vpop.permute.xlu0 %1835
          %1837 = vrot.lane.b32.xlu0 %v431, 32
          %v1838 = vpop.permute.xlu0 %1837
          %1839 = vrot.lane.b32.xlu0 %v432, 32
          %v1840 = vpop.permute.xlu0 %1839
          %1841 = vrot.lane.b32.xlu0 %v433, 32
          %v1842 = vpop.permute.xlu0 %1841
          %1843 = vrot.lane.b32.xlu0 %v434, 32
          %v1844 = vpop.permute.xlu0 %1843
          %1845 = vrot.lane.b32.xlu0 %v435, 32
          %v1846 = vpop.permute.xlu0 %1845
          %1847 = vrot.lane.b32.xlu0 %v436, 32
          %v1848 = vpop.permute.xlu0 %1847
          %1849 = vrot.lane.b32.xlu0 %v437, 32
          %v1850 = vpop.permute.xlu0 %1849
          %1851 = vrot.lane.b32.xlu0 %v438, 32
          %v1852 = vpop.permute.xlu0 %1851
          %1853 = vrot.lane.b32.xlu0 %v439, 32
          %v1854 = vpop.permute.xlu0 %1853
          %vm1903 = vcmask 294146
          %1904 = vst.msk [vmem:[#allocation3 - $0x2] sm:$0xfc] %vm1903, %v1760
          %vm1905 = vcmask 294144
          %1906 = vst.msk [vmem:[#allocation3 + $0x6] sm:$0xff] %vm1905, %v1762
          %vm1907 = vcmask 288000
          %1908 = vst.msk [vmem:[#allocation3 + $0xe] sm:$0x3] %vm1907, %v1764
          %1909 = vst.msk [vmem:[#allocation3 + $0xe] sm:$0xfc] %vm1903, %v1766
          %1910 = vst.msk [vmem:[#allocation3 + $0x16] sm:$0xff] %vm1905, %v1768
          %1911 = vst.msk [vmem:[#allocation3 + $0x1e] sm:$0x3] %vm1907, %v1770
          %1912 = vst.msk [vmem:[#allocation3 + $0x1e] sm:$0xfc] %vm1903, %v1772
          %1913 = vst.msk [vmem:[#allocation3 + $0x26] sm:$0xff] %vm1905, %v1774
          %1914 = vst.msk [vmem:[#allocation3 + $0x2e] sm:$0x3] %vm1907, %v1776
          %1915 = vst.msk [vmem:[#allocation3 + $0x2e] sm:$0xfc] %vm1903, %v1778
          %1916 = vst.msk [vmem:[#allocation3 + $0x36] sm:$0xff] %vm1905, %v1780
          %1917 = vst.msk [vmem:[#allocation3 + $0x3e] sm:$0x3] %vm1907, %v1782
          %1918 = vst.msk [vmem:[#allocation3 + $0x3e] sm:$0xfc] %vm1903, %v1784
          %1919 = vst.msk [vmem:[#allocation3 + $0x46] sm:$0xff] %vm1905, %v1786
          %1920 = vst.msk [vmem:[#allocation3 + $0x4e] sm:$0x3] %vm1907, %v1788
          %1921 = vst.msk [vmem:[#allocation3 + $0x4e] sm:$0xfc] %vm1903, %v1790
          %1922 = vst.msk [vmem:[#allocation3 + $0x56] sm:$0xff] %vm1905, %v1792
          %1923 = vst.msk [vmem:[#allocation3 + $0x5e] sm:$0x3] %vm1907, %v1794
          %1924 = vst.msk [vmem:[#allocation3 + $0x5e] sm:$0xfc] %vm1903, %v1796
          %1925 = vst.msk [vmem:[#allocation3 + $0x66] sm:$0xff] %vm1905, %v1798
          %1926 = vst.msk [vmem:[#allocation3 + $0x6e] sm:$0x3] %vm1907, %v1800
          %1927 = vst.msk [vmem:[#allocation3 + $0x6e] sm:$0xfc] %vm1903, %v1802
          %1928 = vst.msk [vmem:[#allocation3 + $0x76] sm:$0xff] %vm1905, %v1804
          %1929 = vst.msk [vmem:[#allocation3 + $0x7e] sm:$0x3] %vm1907, %v1806
          %1930 = vst.msk [vmem:[#allocation3 + $0x7e] sm:$0xfc] %vm1903, %v1808
          %1931 = vst.msk [vmem:[#allocation3 + $0x86] sm:$0xff] %vm1905, %v1810
          %1932 = vst.msk [vmem:[#allocation3 + $0x8e] sm:$0x3] %vm1907, %v1812
          %1933 = vst.msk [vmem:[#allocation3 + $0x8e] sm:$0xfc] %vm1903, %v1814
          %1934 = vst.msk [vmem:[#allocation3 + $0x96] sm:$0xff] %vm1905, %v1816
          %1935 = vst.msk [vmem:[#allocation3 + $0x9e] sm:$0x3] %vm1907, %v1818
          %1936 = vst.msk [vmem:[#allocation3 + $0x9e] sm:$0xfc] %vm1903, %v1820
          %1937 = vst.msk [vmem:[#allocation3 + $0xa6] sm:$0xff] %vm1905, %v1822
          %1938 = vst.msk [vmem:[#allocation3 + $0xae] sm:$0x3] %vm1907, %v1824
          %1939 = vst.msk [vmem:[#allocation3 + $0xae] sm:$0xfc] %vm1903, %v1826
          %1940 = vst.msk [vmem:[#allocation3 + $0xb6] sm:$0xff] %vm1905, %v1828
          %1941 = vst.msk [vmem:[#allocation3 + $0xbe] sm:$0x3] %vm1907, %v1830
          %1942 = vst.msk [vmem:[#allocation3 + $0xbe] sm:$0xfc] %vm1903, %v1832
          %1943 = vst.msk [vmem:[#allocation3 + $0xc6] sm:$0xff] %vm1905, %v1834
          %1944 = vst.msk [vmem:[#allocation3 + $0xce] sm:$0x3] %vm1907, %v1836
          %1945 = vst.msk [vmem:[#allocation3 + $0xce] sm:$0xfc] %vm1903, %v1838
          %1946 = vst.msk [vmem:[#allocation3 + $0xd6] sm:$0xff] %vm1905, %v1840
          %1947 = vst.msk [vmem:[#allocation3 + $0xde] sm:$0x3] %vm1907, %v1842
          %1948 = vst.msk [vmem:[#allocation3 + $0xde] sm:$0xfc] %vm1903, %v1844
          %1949 = vst.msk [vmem:[#allocation3 + $0xe6] sm:$0xff] %vm1905, %v1846
          %1950 = vst.msk [vmem:[#allocation3 + $0xee] sm:$0x3] %vm1907, %v1848
          %1951 = vst.msk [vmem:[#allocation3 + $0xee] sm:$0xfc] %vm1903, %v1850
          %1952 = vst.msk [vmem:[#allocation3 + $0xf6] sm:$0xff] %vm1905, %v1852
          %1953 = vst.msk [vmem:[#allocation3 + $0xfe] sm:$0x3] %vm1907, %v1854
          %vm1954 = vcmask 1047840
          %1955 = vst.msk [vmem:[#allocation3] sm:$0xff] %vm1954, 0.0
          %1956 = vst.msk [vmem:[#allocation3 + $0x8] sm:$0xff] %vm1954, 0.0
          %1957 = vst.msk [vmem:[#allocation3 + $0x10] sm:$0xff] %vm1954, 0.0
          %1958 = vst.msk [vmem:[#allocation3 + $0x18] sm:$0xff] %vm1954, 0.0
          %1959 = vst.msk [vmem:[#allocation3 + $0x20] sm:$0xff] %vm1954, 0.0
          %1960 = vst.msk [vmem:[#allocation3 + $0x28] sm:$0xff] %vm1954, 0.0
          %1961 = vst.msk [vmem:[#allocation3 + $0x30] sm:$0xff] %vm1954, 0.0
          %1962 = vst.msk [vmem:[#allocation3 + $0x38] sm:$0xff] %vm1954, 0.0
          %1963 = vst.msk [vmem:[#allocation3 + $0x40] sm:$0xff] %vm1954, 0.0
          %1964 = vst.msk [vmem:[#allocation3 + $0x48] sm:$0xff] %vm1954, 0.0
          %1965 = vst.msk [vmem:[#allocation3 + $0x50] sm:$0xff] %vm1954, 0.0
          %1966 = vst.msk [vmem:[#allocation3 + $0x58] sm:$0xff] %vm1954, 0.0
          %1967 = vst.msk [vmem:[#allocation3 + $0x60] sm:$0xff] %vm1954, 0.0
          %1968 = vst.msk [vmem:[#allocation3 + $0x68] sm:$0xff] %vm1954, 0.0
          %1969 = vst.msk [vmem:[#allocation3 + $0x70] sm:$0xff] %vm1954, 0.0
          %1970 = vst.msk [vmem:[#allocation3 + $0x78] sm:$0xff] %vm1954, 0.0
          %1971 = vst.msk [vmem:[#allocation3 + $0x80] sm:$0xff] %vm1954, 0.0
          %1972 = vst.msk [vmem:[#allocation3 + $0x88] sm:$0xff] %vm1954, 0.0
          %1973 = vst.msk [vmem:[#allocation3 + $0x90] sm:$0xff] %vm1954, 0.0
          %1974 = vst.msk [vmem:[#allocation3 + $0x98] sm:$0xff] %vm1954, 0.0
          %1975 = vst.msk [vmem:[#allocation3 + $0xa0] sm:$0xff] %vm1954, 0.0
          %1976 = vst.msk [vmem:[#allocation3 + $0xa8] sm:$0xff] %vm1954, 0.0
          %1977 = vst.msk [vmem:[#allocation3 + $0xb0] sm:$0xff] %vm1954, 0.0
          %1978 = vst.msk [vmem:[#allocation3 + $0xb8] sm:$0xff] %vm1954, 0.0
          %1979 = vst.msk [vmem:[#allocation3 + $0xc0] sm:$0xff] %vm1954, 0.0
          %1980 = vst.msk [vmem:[#allocation3 + $0xc8] sm:$0xff] %vm1954, 0.0
          %1981 = vst.msk [vmem:[#allocation3 + $0xd0] sm:$0xff] %vm1954, 0.0
          %1982 = vst.msk [vmem:[#allocation3 + $0xd8] sm:$0xff] %vm1954, 0.0
          %1983 = vst.msk [vmem:[#allocation3 + $0xe0] sm:$0xff] %vm1954, 0.0
          %1984 = vst.msk [vmem:[#allocation3 + $0xe8] sm:$0xff] %vm1954, 0.0
          %1985 = vst.msk [vmem:[#allocation3 + $0xf0] sm:$0xff] %vm1954, 0.0
          %1986 = vst.msk [vmem:[#allocation3 + $0xf8] sm:$0xff] %vm1954, 0.0
        $region40: #{tpu_custom_call.1} parent=35 // pred_fallthru
          _
        %v1987 = vld [vmem:[#allocation3] sm:$0xff]
        %v1988 = vld [vmem:[#allocation3 + $0x8] sm:$0xff]
        %v1989 = vld [vmem:[#allocation3 + $0x10] sm:$0xff]
        %v1990 = vld [vmem:[#allocation3 + $0x18] sm:$0xff]
        %v1991 = vld [vmem:[#allocation3 + $0x20] sm:$0xff]
        %v1992 = vld [vmem:[#allocation3 + $0x28] sm:$0xff]
        %v1993 = vld [vmem:[#allocation3 + $0x30] sm:$0xff]
        %v1994 = vld [vmem:[#allocation3 + $0x38] sm:$0xff]
        %v1995 = vld [vmem:[#allocation3 + $0x40] sm:$0xff]
        %v1996 = vld [vmem:[#allocation3 + $0x48] sm:$0xff]
        %v1997 = vld [vmem:[#allocation3 + $0x50] sm:$0xff]
        %v1998 = vld [vmem:[#allocation3 + $0x58] sm:$0xff]
        %v1999 = vld [vmem:[#allocation3 + $0x60] sm:$0xff]
        %v2000 = vld [vmem:[#allocation3 + $0x68] sm:$0xff]
        %v2001 = vld [vmem:[#allocation3 + $0x70] sm:$0xff]
        %v2002 = vld [vmem:[#allocation3 + $0x78] sm:$0xff]
        %v2003 = vld [vmem:[#allocation3 + $0x80] sm:$0xff]
        %v2004 = vld [vmem:[#allocation3 + $0x88] sm:$0xff]
        %v2005 = vld [vmem:[#allocation3 + $0x90] sm:$0xff]
        %v2006 = vld [vmem:[#allocation3 + $0x98] sm:$0xff]
        %v2007 = vld [vmem:[#allocation3 + $0xa0] sm:$0xff]
        %v2008 = vld [vmem:[#allocation3 + $0xa8] sm:$0xff]
        %v2009 = vld [vmem:[#allocation3 + $0xb0] sm:$0xff]
        %v2010 = vld [vmem:[#allocation3 + $0xb8] sm:$0xff]
        %v2011 = vld [vmem:[#allocation3 + $0xc0] sm:$0xff]
        %v2012 = vld [vmem:[#allocation3 + $0xc8] sm:$0xff]
        %v2013 = vld [vmem:[#allocation3 + $0xd0] sm:$0xff]
        %v2014 = vld [vmem:[#allocation3 + $0xd8] sm:$0xff]
        %v2015 = vld [vmem:[#allocation3 + $0xe0] sm:$0xff]
        %v2016 = vld [vmem:[#allocation3 + $0xe8] sm:$0xff]
        %v2017 = vld [vmem:[#allocation3 + $0xf0] sm:$0xff]
        %v2018 = vld [vmem:[#allocation3 + $0xf8] sm:$0xff]
        %v2019 = vld [vmem:[%s266] sm:$0xff]
        %v2020 = vld [vmem:[%s266 + $0x8] sm:$0xff]
        %v2021 = vld [vmem:[%s266 + $0x10] sm:$0xff]
        %v2022 = vld [vmem:[%s266 + $0x18] sm:$0xff]
        %v2023 = vld [vmem:[%s266 + $0x20] sm:$0xff]
        %v2024 = vld [vmem:[%s266 + $0x28] sm:$0xff]
        %v2025 = vld [vmem:[%s266 + $0x30] sm:$0xff]
        %v2026 = vld [vmem:[%s266 + $0x38] sm:$0xff]
        %v2027 = vld [vmem:[%s266 + $0x40] sm:$0xff]
        %v2028 = vld [vmem:[%s266 + $0x48] sm:$0xff]
        %v2029 = vld [vmem:[%s266 + $0x50] sm:$0xff]
        %v2030 = vld [vmem:[%s266 + $0x58] sm:$0xff]
        %v2031 = vld [vmem:[%s266 + $0x60] sm:$0xff]
        %v2032 = vld [vmem:[%s266 + $0x68] sm:$0xff]
        %v2033 = vld [vmem:[%s266 + $0x70] sm:$0xff]
        %v2034 = vld [vmem:[%s266 + $0x78] sm:$0xff]
        %2035 = vmatprep.subr.mxu0 0.0
        %2036 = vmatpush1.msra.mxu0 %v2019
        %2037 = vmatprep.subr.mxu0 0.0
        %2038 = vmatpush1.msra.mxu0 %v2020
        %2039 = vmatprep.subr.mxu0 0.0
        %2040 = vmatpush1.msra.mxu0 %v2021
        %2041 = vmatprep.subr.mxu0 0.0
        %2042 = vmatpush1.msra.mxu0 %v2022
        %2043 = vmatprep.subr.mxu0 0.0
        %2044 = vmatpush1.msra.mxu0 %v2023
        %2045 = vmatprep.subr.mxu0 0.0
        %2046 = vmatpush1.msra.mxu0 %v2024
        %2047 = vmatprep.subr.mxu0 0.0
        %2048 = vmatpush1.msra.mxu0 %v2025
        %2049 = vmatprep.subr.mxu0 0.0
        %2050 = vmatpush1.msra.mxu0 %v2026
        %2051 = vmatprep.subr.mxu0 0.0
        %2052 = vmatpush1.msra.mxu0 %v2027
        %2053 = vmatprep.subr.mxu0 0.0
        %2054 = vmatpush1.msra.mxu0 %v2028
        %2055 = vmatprep.subr.mxu0 0.0
        %2056 = vmatpush1.msra.mxu0 %v2029
        %2057 = vmatprep.subr.mxu0 0.0
        %2058 = vmatpush1.msra.mxu0 %v2030
        %2059 = vmatprep.subr.mxu0 0.0
        %2060 = vmatpush1.msra.mxu0 %v2031
        %2061 = vmatprep.subr.mxu0 0.0
        %2062 = vmatpush1.msra.mxu0 %v2032
        %2063 = vmatprep.subr.mxu0 0.0
        %2064 = vmatpush1.msra.mxu0 %v2033
        %2065 = vmatprep.subr.mxu0 0.0
        %2066 = vmatpush1.msra.mxu0 %v2034
        %2067 = vmatprep.subr.mxu0 0.0
        %2068 = vmatpush1.msra.mxu0 0.0
        %2069 = vmatprep.subr.mxu0 0.0
        %2070 = vmatpush1.msra.mxu0 0.0
        %2071 = vmatprep.subr.mxu0 0.0
        %2072 = vmatpush1.msra.mxu0 0.0
        %2073 = vmatprep.subr.mxu0 0.0
        %2074 = vmatpush1.msra.mxu0 0.0
        %2075 = vmatprep.subr.mxu0 0.0
        %2076 = vmatpush1.msra.mxu0 0.0
        %2077 = vmatprep.subr.mxu0 0.0
        %2078 = vmatpush1.msra.mxu0 0.0
        %2079 = vmatprep.subr.mxu0 0.0
        %2080 = vmatpush1.msra.mxu0 0.0
        %2081 = vmatprep.subr.mxu0 0.0
        %2082 = vmatpush1.msra.mxu0 0.0
        %2083 = vmatprep.subr.mxu0 0.0
        %2084 = vmatpush1.msra.mxu0 0.0
        %2085 = vmatprep.subr.mxu0 0.0
        %2086 = vmatpush1.msra.mxu0 0.0
        %2087 = vmatprep.subr.mxu0 0.0
        %2088 = vmatpush1.msra.mxu0 0.0
        %2089 = vmatprep.subr.mxu0 0.0
        %2090 = vmatpush1.msra.mxu0 0.0
        %2091 = vmatprep.subr.mxu0 0.0
        %2092 = vmatpush1.msra.mxu0 0.0
        %2093 = vmatprep.subr.mxu0 0.0
        %2094 = vmatpush1.msra.mxu0 0.0
        %2095 = vmatprep.subr.mxu0 0.0
        %2096 = vmatpush1.msra.mxu0 0.0
        %2097 = vmatprep.subr.mxu0 0.0
        %2098 = vmatpush1.msra.mxu0 0.0
        %2099 = vmatprep.mubr.f32.mxu0 0.0
        %2100 = vmatmul.mubr.f32.gmra.mrb[0].mxu0 %v1987
        %v2101 = vpop.f32.mrb[0].mxu0
        %v2102 = vadd.f32 0.0, %v2101
        %v2103 = vpop.f32.mrb[0].mxu0
        %2104 = vmatprep.mubr.f32.mxu0 0.0
        %2105 = vmatmul.mubr.f32.gmra.mrb[0].mxu0 %v1988
        %v2106 = vpop.f32.mrb[0].mxu0
        %v2107 = vadd.f32 0.0, %v2106
        %v2108 = vpop.f32.mrb[0].mxu0
        %2109 = vmatprep.mubr.f32.mxu0 0.0
        %2110 = vmatmul.mubr.f32.gmra.mrb[0].mxu0 %v1989
        %v2111 = vpop.f32.mrb[0].mxu0
        %v2112 = vadd.f32 0.0, %v2111
        %v2113 = vpop.f32.mrb[0].mxu0
        %2114 = vmatprep.mubr.f32.mxu0 0.0
        %2115 = vmatmul.mubr.f32.gmra.mrb[0].mxu0 %v1990
        %v2116 = vpop.f32.mrb[0].mxu0
        %v2117 = vadd.f32 0.0, %v2116
        %v2118 = vpop.f32.mrb[0].mxu0
        %2119 = vmatprep.mubr.f32.mxu0 0.0
        %2120 = vmatmul.mubr.f32.gmra.mrb[0].mxu0 %v1991
        %v2121 = vpop.f32.mrb[0].mxu0
        %v2122 = vadd.f32 0.0, %v2121
        %v2123 = vpop.f32.mrb[0].mxu0
        %2124 = vmatprep.mubr.f32.mxu0 0.0
        %2125 = vmatmul.mubr.f32.gmra.mrb[0].mxu0 %v1992
        %v2126 = vpop.f32.mrb[0].mxu0
        %v2127 = vadd.f32 0.0, %v2126
        %v2128 = vpop.f32.mrb[0].mxu0
        %2129 = vmatprep.mubr.f32.mxu0 0.0
        %2130 = vmatmul.mubr.f32.gmra.mrb[0].mxu0 %v1993
        %v2131 = vpop.f32.mrb[0].mxu0
        %v2132 = vadd.f32 0.0, %v2131
        %v2133 = vpop.f32.mrb[0].mxu0
        %2134 = vmatprep.mubr.f32.mxu0 0.0
        %2135 = vmatmul.mubr.f32.gmra.mrb[0].mxu0 %v1994
        %v2136 = vpop.f32.mrb[0].mxu0
        %v2137 = vadd.f32 0.0, %v2136
        %v2138 = vpop.f32.mrb[0].mxu0
        %2139 = vmatprep.mubr.f32.mxu0 0.0
        %2140 = vmatmul.mubr.f32.gmra.mrb[0].mxu0 %v1995
        %v2141 = vpop.f32.mrb[0].mxu0
        %v2142 = vadd.f32 0.0, %v2141
        %v2143 = vpop.f32.mrb[0].mxu0
        %2144 = vmatprep.mubr.f32.mxu0 0.0
        %2145 = vmatmul.mubr.f32.gmra.mrb[0].mxu0 %v1996
        %v2146 = vpop.f32.mrb[0].mxu0
        %v2147 = vadd.f32 0.0, %v2146
        %v2148 = vpop.f32.mrb[0].mxu0
        %2149 = vmatprep.mubr.f32.mxu0 0.0
        %2150 = vmatmul.mubr.f32.gmra.mrb[0].mxu0 %v1997
        %v2151 = vpop.f32.mrb[0].mxu0
        %v2152 = vadd.f32 0.0, %v2151
        %v2153 = vpop.f32.mrb[0].mxu0
        %2154 = vmatprep.mubr.f32.mxu0 0.0
        %2155 = vmatmul.mubr.f32.gmra.mrb[0].mxu0 %v1998
        %v2156 = vpop.f32.mrb[0].mxu0
        %v2157 = vadd.f32 0.0, %v2156
        %v2158 = vpop.f32.mrb[0].mxu0
        %2159 = vmatprep.mubr.f32.mxu0 0.0
        %2160 = vmatmul.mubr.f32.gmra.mrb[0].mxu0 %v1999
        %v2161 = vpop.f32.mrb[0].mxu0
        %v2162 = vadd.f32 0.0, %v2161
        %v2163 = vpop.f32.mrb[0].mxu0
        %2164 = vmatprep.mubr.f32.mxu0 0.0
        %2165 = vmatmul.mubr.f32.gmra.mrb[0].mxu0 %v2000
        %v2166 = vpop.f32.mrb[0].mxu0
        %v2167 = vadd.f32 0.0, %v2166
        %v2168 = vpop.f32.mrb[0].mxu0
        %2169 = vmatprep.mubr.f32.mxu0 0.0
        %2170 = vmatmul.mubr.f32.gmra.mrb[0].mxu0 %v2001
        %v2171 = vpop.f32.mrb[0].mxu0
        %v2172 = vadd.f32 0.0, %v2171
        %v2173 = vpop.f32.mrb[0].mxu0
        %2174 = vmatprep.mubr.f32.mxu0 0.0
        %2175 = vmatmul.mubr.f32.gmra.mrb[0].mxu0 %v2002
        %v2176 = vpop.f32.mrb[0].mxu0
        %v2177 = vadd.f32 0.0, %v2176
        %v2178 = vpop.f32.mrb[0].mxu0
        %2179 = vmatprep.mubr.f32.mxu0 0.0
        %2180 = vmatmul.mubr.f32.gmra.mrb[0].mxu0 %v2003
        %v2181 = vpop.f32.mrb[0].mxu0
        %v2182 = vadd.f32 0.0, %v2181
        %v2183 = vpop.f32.mrb[0].mxu0
        %2184 = vmatprep.mubr.f32.mxu0 0.0
        %2185 = vmatmul.mubr.f32.gmra.mrb[0].mxu0 %v2004
        %v2186 = vpop.f32.mrb[0].mxu0
        %v2187 = vadd.f32 0.0, %v2186
        %v2188 = vpop.f32.mrb[0].mxu0
        %2189 = vmatprep.mubr.f32.mxu0 0.0
        %2190 = vmatmul.mubr.f32.gmra.mrb[0].mxu0 %v2005
        %v2191 = vpop.f32.mrb[0].mxu0
        %v2192 = vadd.f32 0.0, %v2191
        %v2193 = vpop.f32.mrb[0].mxu0
        %2194 = vmatprep.mubr.f32.mxu0 0.0
        %2195 = vmatmul.mubr.f32.gmra.mrb[0].mxu0 %v2006
        %v2196 = vpop.f32.mrb[0].mxu0
        %v2197 = vadd.f32 0.0, %v2196
        %v2198 = vpop.f32.mrb[0].mxu0
        %2199 = vmatprep.mubr.f32.mxu0 0.0
        %2200 = vmatmul.mubr.f32.gmra.mrb[0].mxu0 %v2007
        %v2201 = vpop.f32.mrb[0].mxu0
        %v2202 = vadd.f32 0.0, %v2201
        %v2203 = vpop.f32.mrb[0].mxu0
        %2204 = vmatprep.mubr.f32.mxu0 0.0
        %2205 = vmatmul.mubr.f32.gmra.mrb[0].mxu0 %v2008
        %v2206 = vpop.f32.mrb[0].mxu0
        %v2207 = vadd.f32 0.0, %v2206
        %v2208 = vpop.f32.mrb[0].mxu0
        %2209 = vmatprep.mubr.f32.mxu0 0.0
        %2210 = vmatmul.mubr.f32.gmra.mrb[0].mxu0 %v2009
        %v2211 = vpop.f32.mrb[0].mxu0
        %v2212 = vadd.f32 0.0, %v2211
        %v2213 = vpop.f32.mrb[0].mxu0
        %2214 = vmatprep.mubr.f32.mxu0 0.0
        %2215 = vmatmul.mubr.f32.gmra.mrb[0].mxu0 %v2010
        %v2216 = vpop.f32.mrb[0].mxu0
        %v2217 = vadd.f32 0.0, %v2216
        %v2218 = vpop.f32.mrb[0].mxu0
        %2219 = vmatprep.mubr.f32.mxu0 0.0
        %2220 = vmatmul.mubr.f32.gmra.mrb[0].mxu0 %v2011
        %v2221 = vpop.f32.mrb[0].mxu0
        %v2222 = vadd.f32 0.0, %v2221
        %v2223 = vpop.f32.mrb[0].mxu0
        %2224 = vmatprep.mubr.f32.mxu0 0.0
        %2225 = vmatmul.mubr.f32.gmra.mrb[0].mxu0 %v2012
        %v2226 = vpop.f32.mrb[0].mxu0
        %v2227 = vadd.f32 0.0, %v2226
        %v2228 = vpop.f32.mrb[0].mxu0
        %2229 = vmatprep.mubr.f32.mxu0 0.0
        %2230 = vmatmul.mubr.f32.gmra.mrb[0].mxu0 %v2013
        %v2231 = vpop.f32.mrb[0].mxu0
        %v2232 = vadd.f32 0.0, %v2231
        %v2233 = vpop.f32.mrb[0].mxu0
        %2234 = vmatprep.mubr.f32.mxu0 0.0
        %2235 = vmatmul.mubr.f32.gmra.mrb[0].mxu0 %v2014
        %v2236 = vpop.f32.mrb[0].mxu0
        %v2237 = vadd.f32 0.0, %v2236
        %v2238 = vpop.f32.mrb[0].mxu0
        %2239 = vmatprep.mubr.f32.mxu0 0.0
        %2240 = vmatmul.mubr.f32.gmra.mrb[0].mxu0 %v2015
        %v2241 = vpop.f32.mrb[0].mxu0
        %v2242 = vadd.f32 0.0, %v2241
        %v2243 = vpop.f32.mrb[0].mxu0
        %2244 = vmatprep.mubr.f32.mxu0 0.0
        %2245 = vmatmul.mubr.f32.gmra.mrb[0].mxu0 %v2016
        %v2246 = vpop.f32.mrb[0].mxu0
        %v2247 = vadd.f32 0.0, %v2246
        %v2248 = vpop.f32.mrb[0].mxu0
        %2249 = vmatprep.mubr.f32.mxu0 0.0
        %2250 = vmatmul.mubr.f32.gmra.mrb[0].mxu0 %v2017
        %v2251 = vpop.f32.mrb[0].mxu0
        %v2252 = vadd.f32 0.0, %v2251
        %v2253 = vpop.f32.mrb[0].mxu0
        %2254 = vmatprep.mubr.f32.mxu0 0.0
        %2255 = vmatmul.mubr.f32.gmra.mrb[0].mxu0 %v2018
        %v2256 = vpop.f32.mrb[0].mxu0
        %v2257 = vadd.f32 0.0, %v2256
        %v2258 = vpop.f32.mrb[0].mxu0
        %2259 = vdwg.mxu0
        %vm2260 = vcmask 64512
        %2261 = vst.msk [vmem:[%s274] sm:$0xff] %vm2260, %v2102
        %2262 = vst.msk [vmem:[%s274 + $0x8] sm:$0xff] %vm2260, %v2107
        %2263 = vst.msk [vmem:[%s274 + $0x10] sm:$0xff] %vm2260, %v2112
        %2264 = vst.msk [vmem:[%s274 + $0x18] sm:$0xff] %vm2260, %v2117
        %2265 = vst.msk [vmem:[%s274 + $0x20] sm:$0xff] %vm2260, %v2122
        %2266 = vst.msk [vmem:[%s274 + $0x28] sm:$0xff] %vm2260, %v2127
        %2267 = vst.msk [vmem:[%s274 + $0x30] sm:$0xff] %vm2260, %v2132
        %2268 = vst.msk [vmem:[%s274 + $0x38] sm:$0xff] %vm2260, %v2137
        %2269 = vst.msk [vmem:[%s274 + $0x40] sm:$0xff] %vm2260, %v2142
        %2270 = vst.msk [vmem:[%s274 + $0x48] sm:$0xff] %vm2260, %v2147
        %2271 = vst.msk [vmem:[%s274 + $0x50] sm:$0xff] %vm2260, %v2152
        %2272 = vst.msk [vmem:[%s274 + $0x58] sm:$0xff] %vm2260, %v2157
        %2273 = vst.msk [vmem:[%s274 + $0x60] sm:$0xff] %vm2260, %v2162
        %2274 = vst.msk [vmem:[%s274 + $0x68] sm:$0xff] %vm2260, %v2167
        %2275 = vst.msk [vmem:[%s274 + $0x70] sm:$0xff] %vm2260, %v2172
        %2276 = vst.msk [vmem:[%s274 + $0x78] sm:$0xff] %vm2260, %v2177
        %2277 = vst.msk [vmem:[%s274 + $0x80] sm:$0xff] %vm2260, %v2182
        %2278 = vst.msk [vmem:[%s274 + $0x88] sm:$0xff] %vm2260, %v2187
        %2279 = vst.msk [vmem:[%s274 + $0x90] sm:$0xff] %vm2260, %v2192
        %2280 = vst.msk [vmem:[%s274 + $0x98] sm:$0xff] %vm2260, %v2197
        %2281 = vst.msk [vmem:[%s274 + $0xa0] sm:$0xff] %vm2260, %v2202
        %2282 = vst.msk [vmem:[%s274 + $0xa8] sm:$0xff] %vm2260, %v2207
        %2283 = vst.msk [vmem:[%s274 + $0xb0] sm:$0xff] %vm2260, %v2212
        %2284 = vst.msk [vmem:[%s274 + $0xb8] sm:$0xff] %vm2260, %v2217
        %2285 = vst.msk [vmem:[%s274 + $0xc0] sm:$0xff] %vm2260, %v2222
        %2286 = vst.msk [vmem:[%s274 + $0xc8] sm:$0xff] %vm2260, %v2227
        %2287 = vst.msk [vmem:[%s274 + $0xd0] sm:$0xff] %vm2260, %v2232
        %2288 = vst.msk [vmem:[%s274 + $0xd8] sm:$0xff] %vm2260, %v2237
        %2289 = vst.msk [vmem:[%s274 + $0xe0] sm:$0xff] %vm2260, %v2242
        %2290 = vst.msk [vmem:[%s274 + $0xe8] sm:$0xff] %vm2260, %v2247
        %2291 = vst.msk [vmem:[%s274 + $0xf0] sm:$0xff] %vm2260, %v2252
        %2292 = vst.msk [vmem:[%s274 + $0xf8] sm:$0xff] %vm2260, %v2257
        %v2293 = vsel %vm2260, %v2102, 0.0
        %v2294 = vsel %vm2260, %v2107, 0.0
        %v2295 = vadd.f32 %v2293, %v2294
        %v2296 = vsel %vm2260, %v2112, 0.0
        %v2297 = vadd.f32 %v2295, %v2296
        %v2298 = vsel %vm2260, %v2117, 0.0
        %v2299 = vadd.f32 %v2297, %v2298
        %v2300 = vsel %vm2260, %v2122, 0.0
        %v2301 = vadd.f32 %v2299, %v2300
        %v2302 = vsel %vm2260, %v2127, 0.0
        %v2303 = vadd.f32 %v2301, %v2302
        %v2304 = vsel %vm2260, %v2132, 0.0
        %v2305 = vadd.f32 %v2303, %v2304
        %v2306 = vsel %vm2260, %v2137, 0.0
        %v2307 = vadd.f32 %v2305, %v2306
        %v2308 = vsel %vm2260, %v2142, 0.0
        %v2309 = vadd.f32 %v2307, %v2308
        %v2310 = vsel %vm2260, %v2147, 0.0
        %v2311 = vadd.f32 %v2309, %v2310
        %v2312 = vsel %vm2260, %v2152, 0.0
        %v2313 = vadd.f32 %v2311, %v2312
        %v2314 = vsel %vm2260, %v2157, 0.0
        %v2315 = vadd.f32 %v2313, %v2314
        %v2316 = vsel %vm2260, %v2162, 0.0
        %v2317 = vadd.f32 %v2315, %v2316
        %v2318 = vsel %vm2260, %v2167, 0.0
        %v2319 = vadd.f32 %v2317, %v2318
        %v2320 = vsel %vm2260, %v2172, 0.0
        %v2321 = vadd.f32 %v2319, %v2320
        %v2322 = vsel %vm2260, %v2177, 0.0
        %v2323 = vadd.f32 %v2321, %v2322
        %v2324 = vsel %vm2260, %v2182, 0.0
        %v2325 = vadd.f32 %v2323, %v2324
        %v2326 = vsel %vm2260, %v2187, 0.0
        %v2327 = vadd.f32 %v2325, %v2326
        %v2328 = vsel %vm2260, %v2192, 0.0
        %v2329 = vadd.f32 %v2327, %v2328
        %v2330 = vsel %vm2260, %v2197, 0.0
        %v2331 = vadd.f32 %v2329, %v2330
        %v2332 = vsel %vm2260, %v2202, 0.0
        %v2333 = vadd.f32 %v2331, %v2332
        %v2334 = vsel %vm2260, %v2207, 0.0
        %v2335 = vadd.f32 %v2333, %v2334
        %v2336 = vsel %vm2260, %v2212, 0.0
        %v2337 = vadd.f32 %v2335, %v2336
        %v2338 = vsel %vm2260, %v2217, 0.0
        %v2339 = vadd.f32 %v2337, %v2338
        %v2340 = vsel %vm2260, %v2222, 0.0
        %v2341 = vadd.f32 %v2339, %v2340
        %v2342 = vsel %vm2260, %v2227, 0.0
        %v2343 = vadd.f32 %v2341, %v2342
        %v2344 = vsel %vm2260, %v2232, 0.0
        %v2345 = vadd.f32 %v2343, %v2344
        %v2346 = vsel %vm2260, %v2237, 0.0
        %v2347 = vadd.f32 %v2345, %v2346
        %v2348 = vsel %vm2260, %v2242, 0.0
        %v2349 = vadd.f32 %v2347, %v2348
        %v2350 = vsel %vm2260, %v2247, 0.0
        %v2351 = vadd.f32 %v2349, %v2350
        %v2352 = vsel %vm2260, %v2252, 0.0
        %v2353 = vadd.f32 %v2351, %v2352
        %v2354 = vsel %vm2260, %v2257, 0.0
        %v2355 = vadd.f32 %v2353, %v2354
        %v2356 = vrot.slane %v2355, 4
        %v2357 = vadd.f32 %v2355, %v2356
        %v2358 = vrot.slane %v2357, 2
        %v2359 = vadd.f32 %v2357, %v2358
        %v2360 = vrot.slane %v2359, 1
        %v2361 = vadd.f32 %v2359, %v2360
        %v2362 = vmul.f32 %v2102, %v2102
        %v2363 = vmul.f32 %v2107, %v2107
        %v2364 = vmul.f32 %v2112, %v2112
        %v2365 = vmul.f32 %v2117, %v2117
        %v2366 = vmul.f32 %v2122, %v2122
        %v2367 = vmul.f32 %v2127, %v2127
        %v2368 = vmul.f32 %v2132, %v2132
        %v2369 = vmul.f32 %v2137, %v2137
        %v2370 = vmul.f32 %v2142, %v2142
        %v2371 = vmul.f32 %v2147, %v2147
        %v2372 = vmul.f32 %v2152, %v2152
        %v2373 = vmul.f32 %v2157, %v2157
        %v2374 = vmul.f32 %v2162, %v2162
        %v2375 = vmul.f32 %v2167, %v2167
        %v2376 = vmul.f32 %v2172, %v2172
        %v2377 = vmul.f32 %v2177, %v2177
        %v2378 = vmul.f32 %v2182, %v2182
        %v2379 = vmul.f32 %v2187, %v2187
        %v2380 = vmul.f32 %v2192, %v2192
        %v2381 = vmul.f32 %v2197, %v2197
        %v2382 = vmul.f32 %v2202, %v2202
        %v2383 = vmul.f32 %v2207, %v2207
        %v2384 = vmul.f32 %v2212, %v2212
        %v2385 = vmul.f32 %v2217, %v2217
        %v2386 = vmul.f32 %v2222, %v2222
        %v2387 = vmul.f32 %v2227, %v2227
        %v2388 = vmul.f32 %v2232, %v2232
        %v2389 = vmul.f32 %v2237, %v2237
        %v2390 = vmul.f32 %v2242, %v2242
        %v2391 = vmul.f32 %v2247, %v2247
        %v2392 = vmul.f32 %v2252, %v2252
        %v2393 = vmul.f32 %v2257, %v2257
        %v2394 = vsel %vm2260, %v2362, 0.0
        %v2395 = vsel %vm2260, %v2363, 0.0
        %v2396 = vadd.f32 %v2394, %v2395
        %v2397 = vsel %vm2260, %v2364, 0.0
        %v2398 = vadd.f32 %v2396, %v2397
        %v2399 = vsel %vm2260, %v2365, 0.0
        %v2400 = vadd.f32 %v2398, %v2399
        %v2401 = vsel %vm2260, %v2366, 0.0
        %v2402 = vadd.f32 %v2400, %v2401
        %v2403 = vsel %vm2260, %v2367, 0.0
        %v2404 = vadd.f32 %v2402, %v2403
        %v2405 = vsel %vm2260, %v2368, 0.0
        %v2406 = vadd.f32 %v2404, %v2405
        %v2407 = vsel %vm2260, %v2369, 0.0
        %v2408 = vadd.f32 %v2406, %v2407
        %v2409 = vsel %vm2260, %v2370, 0.0
        %v2410 = vadd.f32 %v2408, %v2409
        %v2411 = vsel %vm2260, %v2371, 0.0
        %v2412 = vadd.f32 %v2410, %v2411
        %v2413 = vsel %vm2260, %v2372, 0.0
        %v2414 = vadd.f32 %v2412, %v2413
        %v2415 = vsel %vm2260, %v2373, 0.0
        %v2416 = vadd.f32 %v2414, %v2415
        %v2417 = vsel %vm2260, %v2374, 0.0
        %v2418 = vadd.f32 %v2416, %v2417
        %v2419 = vsel %vm2260, %v2375, 0.0
        %v2420 = vadd.f32 %v2418, %v2419
        %v2421 = vsel %vm2260, %v2376, 0.0
        %v2422 = vadd.f32 %v2420, %v2421
        %v2423 = vsel %vm2260, %v2377, 0.0
        %v2424 = vadd.f32 %v2422, %v2423
        %v2425 = vsel %vm2260, %v2378, 0.0
        %v2426 = vadd.f32 %v2424, %v2425
        %v2427 = vsel %vm2260, %v2379, 0.0
        %v2428 = vadd.f32 %v2426, %v2427
        %v2429 = vsel %vm2260, %v2380, 0.0
        %v2430 = vadd.f32 %v2428, %v2429
        %v2431 = vsel %vm2260, %v2381, 0.0
        %v2432 = vadd.f32 %v2430, %v2431
        %v2433 = vsel %vm2260, %v2382, 0.0
        %v2434 = vadd.f32 %v2432, %v2433
        %v2435 = vsel %vm2260, %v2383, 0.0
        %v2436 = vadd.f32 %v2434, %v2435
        %v2437 = vsel %vm2260, %v2384, 0.0
        %v2438 = vadd.f32 %v2436, %v2437
        %v2439 = vsel %vm2260, %v2385, 0.0
        %v2440 = vadd.f32 %v2438, %v2439
        %v2441 = vsel %vm2260, %v2386, 0.0
        %v2442 = vadd.f32 %v2440, %v2441
        %v2443 = vsel %vm2260, %v2387, 0.0
        %v2444 = vadd.f32 %v2442, %v2443
        %v2445 = vsel %vm2260, %v2388, 0.0
        %v2446 = vadd.f32 %v2444, %v2445
        %v2447 = vsel %vm2260, %v2389, 0.0
        %v2448 = vadd.f32 %v2446, %v2447
        %v2449 = vsel %vm2260, %v2390, 0.0
        %v2450 = vadd.f32 %v2448, %v2449
        %v2451 = vsel %vm2260, %v2391, 0.0
        %v2452 = vadd.f32 %v2450, %v2451
        %v2453 = vsel %vm2260, %v2392, 0.0
        %v2454 = vadd.f32 %v2452, %v2453
        %v2455 = vsel %vm2260, %v2393, 0.0
        %v2456 = vadd.f32 %v2454, %v2455
        %v2457 = vrot.slane %v2456, 4
        %v2458 = vadd.f32 %v2456, %v2457
        %v2459 = vrot.slane %v2458, 2
        %v2460 = vadd.f32 %v2458, %v2459
        %v2461 = vrot.slane %v2460, 1
        %v2462 = vadd.f32 %v2460, %v2461
        %vm2463 = vcmask 1040384
        %v2464 = vsel %vm2463, %v2361, %v2462
        %vm2465 = vcmask 58368
        %2466 = vst.msk [vmem:[%s257] sm:$0x3] %vm2465, %v2464
        %p2467 = scmp.lt.s32.totalorder %s24, 1
        %s2468 = scalar_select %p2467, %s24, 1
        %p2469 = scmp.lt.s32.totalorder %s25, 0
        %s2470 = scalar_select %p2469, %s25, 0
        %s2471 = smul.addr %s2468, 32
        %s2472 = sadd.s32 %s2470, %s2471
        %s2473 = smul.addr %s2472, 8
        %s2474 = scalar_lea.vmem %s4, %s2473
        %s2475 = sand.u32 %s164, 1
        %s2476 = scalar_lea.sflag [#allocation5], %s2475
        %s2477 = sand.u32 %s164, 1
        %s2478 = smul.addr %s2477, 2
        %s2479 = scalar_lea.vmem [#allocation4], %s2478
        // Predicated region
        $region41: #{tpu_custom_call.1} parent=35 // pred_check
          %p2480 = pneg %p146
        $region42: #{tpu_custom_call.1} parent=35 // pred_check_branch
          %2482 = sbr.rel (%p2480) target = $region44
        $region43: #{tpu_custom_call.1} parent=35 // pred_region
          _
        $region44: #{tpu_custom_call.1} parent=35 // pred_fallthru
          _
        // Predicated region
        $region45: #{tpu_custom_call.1} parent=35 // pred_check
          %p2483 = pneg %p174
        $region46: #{tpu_custom_call.1} parent=35 // pred_check_branch
          %2485 = sbr.rel (%p2483) target = $region48
        $region47: #{tpu_custom_call.1} parent=35 // pred_region
          %s2487 = ssub.s32 32, 32
          %2488 = vsyncadd %s2476, %s2487
          %s2489 = sadd.s32 %s25, %s24
          %s2490 = smul.addr %s2489, 32
          %s2491 = scalar_lea.hbm %s5, %s2490
          %s2493 = sshll.u32 %s2479, 4
          %s2494 = int_to_ptr.vmem [resolvable:$true] %s2493
          %2496 = dma.vmem_to_hbm [thread:$0]  %s2494, 32, %s2491, %s2476
        $region48: #{tpu_custom_call.1} parent=35 // pred_fallthru
          _
      $region36: #{tpu_custom_call.1} parent=5 // pred_fallthru
        _
      %p2497 = scmp.le.s32.totalorder 2, %s15
      // Predicated region
      $region49: #{tpu_custom_call.1} parent=5 // pred_check
        %p2498 = pneg %p2497
      $region50: #{tpu_custom_call.1} parent=5 // pred_check_branch
        %2500 = sbr.rel (%p2498) target = $region52
      $region51: #{tpu_custom_call.1} parent=5 // pred_region
        %s2501 = ssub.s32 %s15, 2
        // Predicated region
        $region53: #{tpu_custom_call.1} parent=51 // pred_check
          %p2502 = pneg %p152
        $region54: #{tpu_custom_call.1} parent=51 // pred_check_branch
          %2504 = sbr.rel (%p2502) target = $region56
        $region55: #{tpu_custom_call.1} parent=51 // pred_region
          %p2505 = scmp.lt.s32.totalorder %s26, 1
          %s2506 = scalar_select %p2505, %s26, 1
          %p2507 = scmp.lt.s32.totalorder %s27, 0
          %s2508 = scalar_select %p2507, %s27, 0
          %s2509 = smul.addr %s2506, 32
          %s2510 = sadd.s32 %s2508, %s2509
          %s2511 = smul.addr %s2510, 8
          %s2512 = scalar_lea.vmem %s4, %s2511
        $region56: #{tpu_custom_call.1} parent=51 // pred_fallthru
          _
        // Predicated region
        $region57: #{tpu_custom_call.1} parent=51 // pred_check
          %p2513 = pneg %p180
        $region58: #{tpu_custom_call.1} parent=51 // pred_check_branch
          %2515 = sbr.rel (%p2513) target = $region60
        $region59: #{tpu_custom_call.1} parent=51 // pred_region
          %s2516 = sand.u32 %s165, 1
          %s2517 = scalar_lea.sflag [#allocation5], %s2516
          %s2518 = sand.u32 %s165, 1
          %s2519 = smul.addr %s2518, 2
          %s2520 = scalar_lea.vmem [#allocation4], %s2519
          %2521 = dma.done %s2517, 32
        $region60: #{tpu_custom_call.1} parent=51 // pred_fallthru
          _
      $region52: #{tpu_custom_call.1} parent=5 // pred_fallthru
        _
    $region6: #{tpu_custom_call.1} parent=1 // loop_footer
      %s19 = sadd.s32 1, %s15
    $region7: #{tpu_custom_call.1} parent=1 // loop_footer_branch
      %14 = sbr.rel target = $region3
    $region8: #{tpu_custom_call.1} parent=1 // loop_exit
      _
    %2522 = vsyncpa [#allocation5], 1
    %s2523 = scalar_lea.sflag [#allocation5], 1
    %2524 = vsyncpa %s2523, 1

</llo_original>
